<compile_context>
chip_gen: v5e
topology: v5e:2x2
jax: 0.10.0
libtpu: 0.0.40
codegen_flags: <defaults>
</compile_context>

<pallas_src>
import jax
import jax.numpy as jnp
from jax.experimental import pallas as pl
from jax.experimental.pallas import tpu as pltpu

BT = 8  # batch tile = one sublane tile (8 rows)


def _round_up(n, m):
    return (n + m - 1) // m * m


def _make_kernel(T, I, E, H, L):
    """Fused encoder -> decoder -> fc kernel; one grid point per batch tile."""
    enc_dims = [I] + [E] * (L - 1)
    dec_dims = [E] + [H] * (L - 1)

    def cell_step(pre, h, c, w_hh_t, hid):
        # pre already holds inp @ W_ih^T + b, with i/f/o columns pre-scaled by
        # 0.5 host-side; W_hh^T has the same scaling, so sigmoid(z) for those
        # gates is 0.5*tanh(z/2)+0.5 -> one tanh EUP pass for all 4 gates.
        gates = pre + jnp.dot(h, w_hh_t, preferred_element_type=jnp.float32)
        th = jnp.tanh(gates)            # single EUP traversal of the 4H gates
        sg = 0.5 * th + 0.5             # VPU fma: sigmoid of scaled i/f/o cols
        i_g = sg[:, 0 * hid:1 * hid]
        f_g = sg[:, 1 * hid:2 * hid]
        g_g = th[:, 2 * hid:3 * hid]    # g gate columns were NOT scaled
        o_g = sg[:, 3 * hid:4 * hid]
        c_new = f_g * c + i_g * g_g
        h_new = o_g * jnp.tanh(c_new)
        return h_new, c_new

    def kernel(*refs):
        x_ref = refs[0]
        enc_refs = refs[1:1 + L]
        dec_refs = refs[1 + L:1 + 2 * L]
        fc_ref = refs[1 + 2 * L]
        y_ref = refs[2 + 2 * L]

        # ---------------- encoder, layer-major ----------------
        layer_in = x_ref[...]                       # (T*BT, I), row = t*BT + b
        h = None
        for l in range(L):
            d = enc_dims[l]
            d8 = _round_up(d, 8)
            e8 = _round_up(E, 8)
            pack = enc_refs[l]
            # Slice the ref directly: only the needed blocks are loaded; the
            # pack rows are padded so every slice start is sublane-aligned.
            w_ih_t = pack[0:d, :]                   # (d, 4E)
            w_hh_t = pack[d8:d8 + E, :]             # (E, 4E) - only loop-live weight
            b = pack[d8 + e8:d8 + e8 + 1, :]        # (1, 4E)
            # one batched input projection for all T steps of this layer
            proj = jnp.dot(layer_in, w_ih_t,
                           preferred_element_type=jnp.float32) + b   # (T*BT, 4E)
            h = jnp.zeros((BT, E), jnp.float32)
            c = jnp.zeros((BT, E), jnp.float32)
            keep_seq = l < L - 1
            hs = []
            for t in range(T):
                # BT == 8 -> aligned full-sublane-tile slice (vreg select)
                h, c = cell_step(proj[t * BT:(t + 1) * BT, :], h, c, w_hh_t, E)
                if keep_seq:
                    hs.append(h)
            if keep_seq:
                layer_in = jnp.concatenate(hs, axis=0)   # stays in vregs
        z = h   # == encoded_sequence[:, -1, :] (top-layer hidden, last step)

        # ---------------- decoder, layer-major ----------------
        layer_in = None
        for l in range(L):
            d = dec_dims[l]
            d8 = _round_up(d, 8)
            h8 = _round_up(H, 8)
            pack = dec_refs[l]
            w_ih_t = pack[0:d, :]
            w_hh_t = pack[d8:d8 + H, :]
            b = pack[d8 + h8:d8 + h8 + 1, :]
            if l == 0:
                # constant input z every step -> projection hoisted out of loop
                z_proj = jnp.dot(z, w_ih_t,
                                 preferred_element_type=jnp.float32) + b   # (BT, 4H)
            else:
                proj = jnp.dot(layer_in, w_ih_t,
                               preferred_element_type=jnp.float32) + b     # (T*BT, 4H)
            h = jnp.zeros((BT, H), jnp.float32)
            c = jnp.zeros((BT, H), jnp.float32)
            hs = []
            for t in range(T):
                pre = z_proj if l == 0 else proj[t * BT:(t + 1) * BT, :]
                h, c = cell_step(pre, h, c, w_hh_t, H)
                hs.append(h)
            layer_in = jnp.concatenate(hs, axis=0)       # (T*BT, H)

        # ---------------- final FC, batched over all T*BT rows ----------------
        h8 = _round_up(H, 8)
        wfc_t = fc_ref[0:H, :]
        bfc = fc_ref[h8:h8 + 1, :]
        y2d = jnp.dot(layer_in, wfc_t, preferred_element_type=jnp.float32) + bfc
        y_ref[...] = y2d.astype(y_ref.dtype)             # single slab store

    return kernel


def lstm_autoencoder_forward(x, params, *, encoded_size, hidden_size, num_layers):
    B, T, I = x.shape
    E, H, L = encoded_size, hidden_size, num_layers
    assert E == H, "original module requires encoded_size == hidden_size"

    n_tiles = (B + BT - 1) // BT
    B_pad = n_tiles * BT

    # Pad batch to whole 8-row sublane tiles; within a tile rows are ordered
    # t*BT + b so every per-step gate slice is one aligned sublane tile.
    # (Wrapper-side transpose/reshape is layout plumbing, done once by XLA.)
    xp = jnp.zeros((B_pad, T, I), jnp.float32).at[:B].set(x.astype(jnp.float32))
    x3 = (xp.reshape(n_tiles, BT, T, I)
            .transpose(0, 2, 1, 3)
            .reshape(n_tiles, T * BT, I))

    packs = list(params["enc_packs"]) + list(params["dec_packs"]) + [params["fc_pack"]]
    flat = [x3] + packs

    in_specs = [pl.BlockSpec((None, T * BT, I), lambda i: (i, 0, 0))]
    in_specs += [pl.BlockSpec(p.shape, lambda i: (0, 0)) for p in packs]
    out_spec = pl.BlockSpec((None, T * BT, I), lambda i: (i, 0, 0))

    kernel = _make_kernel(T, I, E, H, L)
    y3 = pl.pallas_call(
        kernel,
        out_shape=jax.ShapeDtypeStruct((n_tiles, T * BT, I), jnp.float32),
        grid=(n_tiles,),
        in_specs=in_specs,
        out_specs=out_spec,
        # "parallel" lets v7x shard batch tiles across its 2 TensorCores; with
        # a single tile (B<=8) it is identical to no grid on v5e/v6e.
        compiler_params=pltpu.CompilerParams(
            dimension_semantics=("parallel",)),
    )(*flat)

    y = (y3.reshape(n_tiles, T, BT, I)
           .transpose(0, 2, 1, 3)
           .reshape(B_pad, T, I))[:B]
    return y


def init_params(key, input_size, encoded_size, hidden_size, num_layers):
    """Deterministic PyTorch-style init (U(-1/sqrt(H), 1/sqrt(H))).

    Returns raw weights (for the pure-JAX reference) plus kernel-ready packs:
        pack = [ W_ih^T (i/f/o cols * 0.5) ; zero-pad to 8 rows ;
                 W_hh^T (i/f/o cols * 0.5) ; zero-pad to 8 rows ;
                 (b_ih + b_hh) (i/f/o * 0.5) ]
    Row padding keeps every kernel ref-slice sublane-aligned; the 0.5 scaling
    lets the kernel evaluate the sigmoid gates with the same tanh pass used
    for the g gate (sigmoid(z) = 0.5*tanh(z/2) + 0.5).
    """
    def lstm_raw(k, in_dim, hid):
        k1, k2, k3, k4 = jax.random.split(k, 4)
        bound = float(hid) ** -0.5
        w_ih = jax.random.uniform(k1, (4 * hid, in_dim), jnp.float32, -bound, bound)
        w_hh = jax.random.uniform(k2, (4 * hid, hid), jnp.float32, -bound, bound)
        b_ih = jax.random.uniform(k3, (4 * hid,), jnp.float32, -bound, bound)
        b_hh = jax.random.uniform(k4, (4 * hid,), jnp.float32, -bound, bound)
        return w_ih, w_hh, b_ih + b_hh

    def lstm_pack(w_ih, w_hh, b, hid):
        d_in = w_ih.shape[1]
        scale = jnp.concatenate([jnp.full((hid,), 0.5), jnp.full((hid,), 0.5),
                                 jnp.ones((hid,)), jnp.full((hid,), 0.5)]
                                ).astype(jnp.float32)
        w_ih_t = (w_ih * scale[:, None]).T          # (d_in, 4H)
        w_hh_t = (w_hh * scale[:, None]).T          # (H, 4H)
        b_s = b * scale
        d8 = _round_up(d_in, 8)
        h8 = _round_up(hid, 8)
        pack = jnp.zeros((d8 + h8 + 1, 4 * hid), jnp.float32)
        pack = pack.at[0:d_in].set(w_ih_t)
        pack = pack.at[d8:d8 + hid].set(w_hh_t)
        pack = pack.at[d8 + h8].set(b_s)
        return pack

    E, H, L = encoded_size, hidden_size, num_layers
    enc_dims = [input_size] + [E] * (L - 1)
    dec_dims = [E] + [H] * (L - 1)
    keys = jax.random.split(key, 2 * L + 1)
    enc_raw = [lstm_raw(keys[l], enc_dims[l], E) for l in range(L)]
    dec_raw = [lstm_raw(keys[L + l], dec_dims[l], H) for l in range(L)]

    kf1, kf2 = jax.random.split(keys[-1])
    bound = float(H) ** -0.5
    fc_w = jax.random.uniform(kf1, (input_size, H), jnp.float32, -bound, bound)
    fc_b = jax.random.uniform(kf2, (input_size,), jnp.float32, -bound, bound)
    h8 = _round_up(H, 8)
    fc_pack = jnp.zeros((h8 + 1, input_size), jnp.float32)
    fc_pack = fc_pack.at[0:H].set(fc_w.T)
    fc_pack = fc_pack.at[h8].set(fc_b)

    return {
        "enc_raw": enc_raw, "dec_raw": dec_raw, "fc_w": fc_w, "fc_b": fc_b,
        "enc_packs": [lstm_pack(*r, E) for r in enc_raw],
        "dec_packs": [lstm_pack(*r, H) for r in dec_raw],
        "fc_pack": fc_pack,
    }


def reference_forward(x, params, *, encoded_size, hidden_size, num_layers):
    """Pure-JAX reference in the conventional per-step / sigmoid form, built
    from the raw (unscaled, unpacked) parameters."""
    B, T, I = x.shape
    E, H, L = encoded_size, hidden_size, num_layers

    def cell(inp, h, c, w_ih, w_hh, b, hid):
        g = inp @ w_ih.T + h @ w_hh.T + b
        i = jax.nn.sigmoid(g[:, 0:hid])
        f = jax.nn.sigmoid(g[:, hid:2 * hid])
        gg = jnp.tanh(g[:, 2 * hid:3 * hid])
        o = jax.nn.sigmoid(g[:, 3 * hid:4 * hid])
        c2 = f * c + i * gg
        return o * jnp.tanh(c2), c2

    h = [jnp.zeros((B, E)) for _ in range(L)]
    c = [jnp.zeros((B, E)) for _ in range(L)]
    for t in range(T):
        inp = x[:, t, :]
        for l in range(L):
            h[l], c[l] = cell(inp, h[l], c[l], *params["enc_raw"][l], E)
            inp = h[l]
    z = h[L - 1]

    hd = [jnp.zeros((B, H)) for _ in range(L)]
    cd = [jnp.zeros((B, H)) for _ in range(L)]
    outs = []
    for t in range(T):
        inp = z
        for l in range(L):
            hd[l], cd[l] = cell(inp, hd[l], cd[l], *params["dec_raw"][l], H)
            inp = hd[l]
        outs.append((inp @ params["fc_w"].T + params["fc_b"])[:, None, :])
    return jnp.concatenate(outs, axis=1)


if __name__ == "__main__":
    # Small shapes consistent with the module's forward.
    B = 2
    sequence_length = 8
    input_size = 16
    encoded_size = 32   # must equal hidden_size for the original module to run
    hidden_size = 32
    num_layers = 2

    key = jax.random.PRNGKey(0)
    kx, kp = jax.random.split(key)
    x = jax.random.normal(kx, (B, sequence_length, input_size), dtype=jnp.float32)
    params = init_params(kp, input_size, encoded_size, hidden_size, num_layers)

    y = lstm_autoencoder_forward(
        x, params, encoded_size=encoded_size, hidden_size=hidden_size,
        num_layers=num_layers)
    y = jax.block_until_ready(y)

    assert y.shape == (B, sequence_length, input_size), y.shape

    y_ref = reference_forward(
        x, params, encoded_size=encoded_size, hidden_size=hidden_size,
        num_layers=num_layers)
    err = float(jnp.max(jnp.abs(y - y_ref)))
    assert err < 2e-3, err

    print("KERNEL_OK")
</pallas_src>

<mosaic_0001>
module attributes {stable_mosaic.version = 11 : i64} {
  func.func @kernel(%arg0: i32, %arg1: memref<1x64x16xf32, #tpu.memory_space<vmem>>, %arg2: memref<49x128xf32, #tpu.memory_space<vmem>>, %arg3: memref<65x128xf32, #tpu.memory_space<vmem>>, %arg4: memref<65x128xf32, #tpu.memory_space<vmem>>, %arg5: memref<65x128xf32, #tpu.memory_space<vmem>>, %arg6: memref<33x16xf32, #tpu.memory_space<vmem>>, %arg7: memref<1x64x16xf32, #tpu.memory_space<vmem>>) attributes {dimension_semantics = [#tpu.dimension_semantics<parallel>], iteration_bounds = array<i64: 1>, scalar_prefetch = 0 : i64, scratch_operands = 0 : i64, tpu.core_type = #tpu.core_type<tc>, window_params = [{transform_indices = @transform_0, window_bounds = array<i64: 1, 64, 16>}, {pipeline_mode = #tpu.pipeline_mode<synchronous>, transform_indices = @transform_1, window_bounds = array<i64: 49, 128>}, {pipeline_mode = #tpu.pipeline_mode<synchronous>, transform_indices = @transform_2, window_bounds = array<i64: 65, 128>}, {pipeline_mode = #tpu.pipeline_mode<synchronous>, transform_indices = @transform_3, window_bounds = array<i64: 65, 128>}, {pipeline_mode = #tpu.pipeline_mode<synchronous>, transform_indices = @transform_4, window_bounds = array<i64: 65, 128>}, {pipeline_mode = #tpu.pipeline_mode<synchronous>, transform_indices = @transform_5, window_bounds = array<i64: 33, 16>}, {transform_indices = @transform_6, window_bounds = array<i64: 1, 64, 16>}]} {
    %c0 = arith.constant 0 : index
    %c0_0 = arith.constant 0 : index
    %c0_1 = arith.constant 0 : index
    %0 = vector.load %arg1[%c0, %c0_0, %c0_1] : memref<1x64x16xf32, #tpu.memory_space<vmem>>, vector<1x64x16xf32>
    %1 = vector.shape_cast %0 : vector<1x64x16xf32> to vector<64x16xf32>
    %c0_2 = arith.constant 0 : index
    %c0_3 = arith.constant 0 : index
    %2 = vector.load %arg2[%c0_2, %c0_3] : memref<49x128xf32, #tpu.memory_space<vmem>>, vector<16x128xf32>
    %c16 = arith.constant 16 : index
    %c0_4 = arith.constant 0 : index
    %3 = vector.load %arg2[%c16, %c0_4] : memref<49x128xf32, #tpu.memory_space<vmem>>, vector<32x128xf32>
    %c48 = arith.constant 48 : index
    %c0_5 = arith.constant 0 : index
    %4 = vector.load %arg2[%c48, %c0_5] : memref<49x128xf32, #tpu.memory_space<vmem>>, vector<1x128xf32>
    %cst = arith.constant dense<0.000000e+00> : vector<64x128xf32>
    %5 = tpu.matmul %1, %2, %cst {dimension_numbers = #tpu.dot_dimension_numbers<[1], [0], [0], [1], [0, 0, 1, 1], [], []>} : vector<64x16xf32>, vector<16x128xf32>, vector<64x128xf32> -> vector<64x128xf32>
    %6 = vector.broadcast %4 : vector<1x128xf32> to vector<64x128xf32>
    %7 = arith.addf %5, %6 : vector<64x128xf32>
    %cst_6 = arith.constant 0.000000e+00 : f32
    %8 = vector.broadcast %cst_6 : f32 to vector<8x32xf32>
    %cst_7 = arith.constant 0.000000e+00 : f32
    %9 = vector.broadcast %cst_7 : f32 to vector<8x32xf32>
    %10 = vector.extract_strided_slice %7 {offsets = [0, 0], sizes = [8, 128], strides = [1, 1]} : vector<64x128xf32> to vector<8x128xf32>
    %cst_8 = arith.constant dense<0.000000e+00> : vector<8x128xf32>
    %11 = tpu.matmul %8, %3, %cst_8 {dimension_numbers = #tpu.dot_dimension_numbers<[1], [0], [0], [1], [0, 0, 1, 1], [], []>} : vector<8x32xf32>, vector<32x128xf32>, vector<8x128xf32> -> vector<8x128xf32>
    %12 = arith.addf %10, %11 : vector<8x128xf32>
    %13 = math.tanh %12 : vector<8x128xf32>
    %cst_9 = arith.constant 5.000000e-01 : f32
    %14 = vector.broadcast %cst_9 : f32 to vector<8x128xf32>
    %15 = arith.mulf %14, %13 : vector<8x128xf32>
    %cst_10 = arith.constant 5.000000e-01 : f32
    %16 = vector.broadcast %cst_10 : f32 to vector<8x128xf32>
    %17 = arith.addf %15, %16 : vector<8x128xf32>
    %18 = vector.extract_strided_slice %17 {offsets = [0, 0], sizes = [8, 32], strides = [1, 1]} : vector<8x128xf32> to vector<8x32xf32>
    %19 = vector.extract_strided_slice %17 {offsets = [0, 32], sizes = [8, 32], strides = [1, 1]} : vector<8x128xf32> to vector<8x32xf32>
    %20 = vector.extract_strided_slice %13 {offsets = [0, 64], sizes = [8, 32], strides = [1, 1]} : vector<8x128xf32> to vector<8x32xf32>
    %21 = vector.extract_strided_slice %17 {offsets = [0, 96], sizes = [8, 32], strides = [1, 1]} : vector<8x128xf32> to vector<8x32xf32>
    %22 = arith.mulf %19, %9 : vector<8x32xf32>
    %23 = arith.mulf %18, %20 : vector<8x32xf32>
    %24 = arith.addf %22, %23 : vector<8x32xf32>
    %25 = math.tanh %24 : vector<8x32xf32>
    %26 = arith.mulf %21, %25 : vector<8x32xf32>
    %27 = vector.extract_strided_slice %7 {offsets = [8, 0], sizes = [8, 128], strides = [1, 1]} : vector<64x128xf32> to vector<8x128xf32>
    %cst_11 = arith.constant dense<0.000000e+00> : vector<8x128xf32>
    %28 = tpu.matmul %26, %3, %cst_11 {dimension_numbers = #tpu.dot_dimension_numbers<[1], [0], [0], [1], [0, 0, 1, 1], [], []>} : vector<8x32xf32>, vector<32x128xf32>, vector<8x128xf32> -> vector<8x128xf32>
    %29 = arith.addf %27, %28 : vector<8x128xf32>
    %30 = math.tanh %29 : vector<8x128xf32>
    %cst_12 = arith.constant 5.000000e-01 : f32
    %31 = vector.broadcast %cst_12 : f32 to vector<8x128xf32>
    %32 = arith.mulf %31, %30 : vector<8x128xf32>
    %cst_13 = arith.constant 5.000000e-01 : f32
    %33 = vector.broadcast %cst_13 : f32 to vector<8x128xf32>
    %34 = arith.addf %32, %33 : vector<8x128xf32>
    %35 = vector.extract_strided_slice %34 {offsets = [0, 0], sizes = [8, 32], strides = [1, 1]} : vector<8x128xf32> to vector<8x32xf32>
    %36 = vector.extract_strided_slice %34 {offsets = [0, 32], sizes = [8, 32], strides = [1, 1]} : vector<8x128xf32> to vector<8x32xf32>
    %37 = vector.extract_strided_slice %30 {offsets = [0, 64], sizes = [8, 32], strides = [1, 1]} : vector<8x128xf32> to vector<8x32xf32>
    %38 = vector.extract_strided_slice %34 {offsets = [0, 96], sizes = [8, 32], strides = [1, 1]} : vector<8x128xf32> to vector<8x32xf32>
    %39 = arith.mulf %36, %24 : vector<8x32xf32>
    %40 = arith.mulf %35, %37 : vector<8x32xf32>
    %41 = arith.addf %39, %40 : vector<8x32xf32>
    %42 = math.tanh %41 : vector<8x32xf32>
    %43 = arith.mulf %38, %42 : vector<8x32xf32>
    %44 = vector.extract_strided_slice %7 {offsets = [16, 0], sizes = [8, 128], strides = [1, 1]} : vector<64x128xf32> to vector<8x128xf32>
    %cst_14 = arith.constant dense<0.000000e+00> : vector<8x128xf32>
    %45 = tpu.matmul %43, %3, %cst_14 {dimension_numbers = #tpu.dot_dimension_numbers<[1], [0], [0], [1], [0, 0, 1, 1], [], []>} : vector<8x32xf32>, vector<32x128xf32>, vector<8x128xf32> -> vector<8x128xf32>
    %46 = arith.addf %44, %45 : vector<8x128xf32>
    %47 = math.tanh %46 : vector<8x128xf32>
    %cst_15 = arith.constant 5.000000e-01 : f32
    %48 = vector.broadcast %cst_15 : f32 to vector<8x128xf32>
    %49 = arith.mulf %48, %47 : vector<8x128xf32>
    %cst_16 = arith.constant 5.000000e-01 : f32
    %50 = vector.broadcast %cst_16 : f32 to vector<8x128xf32>
    %51 = arith.addf %49, %50 : vector<8x128xf32>
    %52 = vector.extract_strided_slice %51 {offsets = [0, 0], sizes = [8, 32], strides = [1, 1]} : vector<8x128xf32> to vector<8x32xf32>
    %53 = vector.extract_strided_slice %51 {offsets = [0, 32], sizes = [8, 32], strides = [1, 1]} : vector<8x128xf32> to vector<8x32xf32>
    %54 = vector.extract_strided_slice %47 {offsets = [0, 64], sizes = [8, 32], strides = [1, 1]} : vector<8x128xf32> to vector<8x32xf32>
    %55 = vector.extract_strided_slice %51 {offsets = [0, 96], sizes = [8, 32], strides = [1, 1]} : vector<8x128xf32> to vector<8x32xf32>
    %56 = arith.mulf %53, %41 : vector<8x32xf32>
    %57 = arith.mulf %52, %54 : vector<8x32xf32>
    %58 = arith.addf %56, %57 : vector<8x32xf32>
    %59 = math.tanh %58 : vector<8x32xf32>
    %60 = arith.mulf %55, %59 : vector<8x32xf32>
    %61 = vector.extract_strided_slice %7 {offsets = [24, 0], sizes = [8, 128], strides = [1, 1]} : vector<64x128xf32> to vector<8x128xf32>
    %cst_17 = arith.constant dense<0.000000e+00> : vector<8x128xf32>
    %62 = tpu.matmul %60, %3, %cst_17 {dimension_numbers = #tpu.dot_dimension_numbers<[1], [0], [0], [1], [0, 0, 1, 1], [], []>} : vector<8x32xf32>, vector<32x128xf32>, vector<8x128xf32> -> vector<8x128xf32>
    %63 = arith.addf %61, %62 : vector<8x128xf32>
    %64 = math.tanh %63 : vector<8x128xf32>
    %cst_18 = arith.constant 5.000000e-01 : f32
    %65 = vector.broadcast %cst_18 : f32 to vector<8x128xf32>
    %66 = arith.mulf %65, %64 : vector<8x128xf32>
    %cst_19 = arith.constant 5.000000e-01 : f32
    %67 = vector.broadcast %cst_19 : f32 to vector<8x128xf32>
    %68 = arith.addf %66, %67 : vector<8x128xf32>
    %69 = vector.extract_strided_slice %68 {offsets = [0, 0], sizes = [8, 32], strides = [1, 1]} : vector<8x128xf32> to vector<8x32xf32>
    %70 = vector.extract_strided_slice %68 {offsets = [0, 32], sizes = [8, 32], strides = [1, 1]} : vector<8x128xf32> to vector<8x32xf32>
    %71 = vector.extract_strided_slice %64 {offsets = [0, 64], sizes = [8, 32], strides = [1, 1]} : vector<8x128xf32> to vector<8x32xf32>
    %72 = vector.extract_strided_slice %68 {offsets = [0, 96], sizes = [8, 32], strides = [1, 1]} : vector<8x128xf32> to vector<8x32xf32>
    %73 = arith.mulf %70, %58 : vector<8x32xf32>
    %74 = arith.mulf %69, %71 : vector<8x32xf32>
    %75 = arith.addf %73, %74 : vector<8x32xf32>
    %76 = math.tanh %75 : vector<8x32xf32>
    %77 = arith.mulf %72, %76 : vector<8x32xf32>
    %78 = vector.extract_strided_slice %7 {offsets = [32, 0], sizes = [8, 128], strides = [1, 1]} : vector<64x128xf32> to vector<8x128xf32>
    %cst_20 = arith.constant dense<0.000000e+00> : vector<8x128xf32>
    %79 = tpu.matmul %77, %3, %cst_20 {dimension_numbers = #tpu.dot_dimension_numbers<[1], [0], [0], [1], [0, 0, 1, 1], [], []>} : vector<8x32xf32>, vector<32x128xf32>, vector<8x128xf32> -> vector<8x128xf32>
    %80 = arith.addf %78, %79 : vector<8x128xf32>
    %81 = math.tanh %80 : vector<8x128xf32>
    %cst_21 = arith.constant 5.000000e-01 : f32
    %82 = vector.broadcast %cst_21 : f32 to vector<8x128xf32>
    %83 = arith.mulf %82, %81 : vector<8x128xf32>
    %cst_22 = arith.constant 5.000000e-01 : f32
    %84 = vector.broadcast %cst_22 : f32 to vector<8x128xf32>
    %85 = arith.addf %83, %84 : vector<8x128xf32>
    %86 = vector.extract_strided_slice %85 {offsets = [0, 0], sizes = [8, 32], strides = [1, 1]} : vector<8x128xf32> to vector<8x32xf32>
    %87 = vector.extract_strided_slice %85 {offsets = [0, 32], sizes = [8, 32], strides = [1, 1]} : vector<8x128xf32> to vector<8x32xf32>
    %88 = vector.extract_strided_slice %81 {offsets = [0, 64], sizes = [8, 32], strides = [1, 1]} : vector<8x128xf32> to vector<8x32xf32>
    %89 = vector.extract_strided_slice %85 {offsets = [0, 96], sizes = [8, 32], strides = [1, 1]} : vector<8x128xf32> to vector<8x32xf32>
    %90 = arith.mulf %87, %75 : vector<8x32xf32>
    %91 = arith.mulf %86, %88 : vector<8x32xf32>
    %92 = arith.addf %90, %91 : vector<8x32xf32>
    %93 = math.tanh %92 : vector<8x32xf32>
    %94 = arith.mulf %89, %93 : vector<8x32xf32>
    %95 = vector.extract_strided_slice %7 {offsets = [40, 0], sizes = [8, 128], strides = [1, 1]} : vector<64x128xf32> to vector<8x128xf32>
    %cst_23 = arith.constant dense<0.000000e+00> : vector<8x128xf32>
    %96 = tpu.matmul %94, %3, %cst_23 {dimension_numbers = #tpu.dot_dimension_numbers<[1], [0], [0], [1], [0, 0, 1, 1], [], []>} : vector<8x32xf32>, vector<32x128xf32>, vector<8x128xf32> -> vector<8x128xf32>
    %97 = arith.addf %95, %96 : vector<8x128xf32>
    %98 = math.tanh %97 : vector<8x128xf32>
    %cst_24 = arith.constant 5.000000e-01 : f32
    %99 = vector.broadcast %cst_24 : f32 to vector<8x128xf32>
    %100 = arith.mulf %99, %98 : vector<8x128xf32>
    %cst_25 = arith.constant 5.000000e-01 : f32
    %101 = vector.broadcast %cst_25 : f32 to vector<8x128xf32>
    %102 = arith.addf %100, %101 : vector<8x128xf32>
    %103 = vector.extract_strided_slice %102 {offsets = [0, 0], sizes = [8, 32], strides = [1, 1]} : vector<8x128xf32> to vector<8x32xf32>
    %104 = vector.extract_strided_slice %102 {offsets = [0, 32], sizes = [8, 32], strides = [1, 1]} : vector<8x128xf32> to vector<8x32xf32>
    %105 = vector.extract_strided_slice %98 {offsets = [0, 64], sizes = [8, 32], strides = [1, 1]} : vector<8x128xf32> to vector<8x32xf32>
    %106 = vector.extract_strided_slice %102 {offsets = [0, 96], sizes = [8, 32], strides = [1, 1]} : vector<8x128xf32> to vector<8x32xf32>
    %107 = arith.mulf %104, %92 : vector<8x32xf32>
    %108 = arith.mulf %103, %105 : vector<8x32xf32>
    %109 = arith.addf %107, %108 : vector<8x32xf32>
    %110 = math.tanh %109 : vector<8x32xf32>
    %111 = arith.mulf %106, %110 : vector<8x32xf32>
    %112 = vector.extract_strided_slice %7 {offsets = [48, 0], sizes = [8, 128], strides = [1, 1]} : vector<64x128xf32> to vector<8x128xf32>
    %cst_26 = arith.constant dense<0.000000e+00> : vector<8x128xf32>
    %113 = tpu.matmul %111, %3, %cst_26 {dimension_numbers = #tpu.dot_dimension_numbers<[1], [0], [0], [1], [0, 0, 1, 1], [], []>} : vector<8x32xf32>, vector<32x128xf32>, vector<8x128xf32> -> vector<8x128xf32>
    %114 = arith.addf %112, %113 : vector<8x128xf32>
    %115 = math.tanh %114 : vector<8x128xf32>
    %cst_27 = arith.constant 5.000000e-01 : f32
    %116 = vector.broadcast %cst_27 : f32 to vector<8x128xf32>
    %117 = arith.mulf %116, %115 : vector<8x128xf32>
    %cst_28 = arith.constant 5.000000e-01 : f32
    %118 = vector.broadcast %cst_28 : f32 to vector<8x128xf32>
    %119 = arith.addf %117, %118 : vector<8x128xf32>
    %120 = vector.extract_strided_slice %119 {offsets = [0, 0], sizes = [8, 32], strides = [1, 1]} : vector<8x128xf32> to vector<8x32xf32>
    %121 = vector.extract_strided_slice %119 {offsets = [0, 32], sizes = [8, 32], strides = [1, 1]} : vector<8x128xf32> to vector<8x32xf32>
    %122 = vector.extract_strided_slice %115 {offsets = [0, 64], sizes = [8, 32], strides = [1, 1]} : vector<8x128xf32> to vector<8x32xf32>
    %123 = vector.extract_strided_slice %119 {offsets = [0, 96], sizes = [8, 32], strides = [1, 1]} : vector<8x128xf32> to vector<8x32xf32>
    %124 = arith.mulf %121, %109 : vector<8x32xf32>
    %125 = arith.mulf %120, %122 : vector<8x32xf32>
    %126 = arith.addf %124, %125 : vector<8x32xf32>
    %127 = math.tanh %126 : vector<8x32xf32>
    %128 = arith.mulf %123, %127 : vector<8x32xf32>
    %129 = vector.extract_strided_slice %7 {offsets = [56, 0], sizes = [8, 128], strides = [1, 1]} : vector<64x128xf32> to vector<8x128xf32>
    %cst_29 = arith.constant dense<0.000000e+00> : vector<8x128xf32>
    %130 = tpu.matmul %128, %3, %cst_29 {dimension_numbers = #tpu.dot_dimension_numbers<[1], [0], [0], [1], [0, 0, 1, 1], [], []>} : vector<8x32xf32>, vector<32x128xf32>, vector<8x128xf32> -> vector<8x128xf32>
    %131 = arith.addf %129, %130 : vector<8x128xf32>
    %132 = math.tanh %131 : vector<8x128xf32>
    %cst_30 = arith.constant 5.000000e-01 : f32
    %133 = vector.broadcast %cst_30 : f32 to vector<8x128xf32>
    %134 = arith.mulf %133, %132 : vector<8x128xf32>
    %cst_31 = arith.constant 5.000000e-01 : f32
    %135 = vector.broadcast %cst_31 : f32 to vector<8x128xf32>
    %136 = arith.addf %134, %135 : vector<8x128xf32>
    %137 = vector.extract_strided_slice %136 {offsets = [0, 0], sizes = [8, 32], strides = [1, 1]} : vector<8x128xf32> to vector<8x32xf32>
    %138 = vector.extract_strided_slice %136 {offsets = [0, 32], sizes = [8, 32], strides = [1, 1]} : vector<8x128xf32> to vector<8x32xf32>
    %139 = vector.extract_strided_slice %132 {offsets = [0, 64], sizes = [8, 32], strides = [1, 1]} : vector<8x128xf32> to vector<8x32xf32>
    %140 = vector.extract_strided_slice %136 {offsets = [0, 96], sizes = [8, 32], strides = [1, 1]} : vector<8x128xf32> to vector<8x32xf32>
    %141 = arith.mulf %138, %126 : vector<8x32xf32>
    %142 = arith.mulf %137, %139 : vector<8x32xf32>
    %143 = arith.addf %141, %142 : vector<8x32xf32>
    %144 = math.tanh %143 : vector<8x32xf32>
    %145 = arith.mulf %140, %144 : vector<8x32xf32>
    %146 = tpu.concatenate %26, %43, %60, %77, %94, %111, %128, %145 in 0 : vector<8x32xf32>, vector<8x32xf32>, vector<8x32xf32>, vector<8x32xf32>, vector<8x32xf32>, vector<8x32xf32>, vector<8x32xf32>, vector<8x32xf32> -> vector<64x32xf32>
    %c0_32 = arith.constant 0 : index
    %c0_33 = arith.constant 0 : index
    %147 = vector.load %arg3[%c0_32, %c0_33] : memref<65x128xf32, #tpu.memory_space<vmem>>, vector<32x128xf32>
    %c32 = arith.constant 32 : index
    %c0_34 = arith.constant 0 : index
    %148 = vector.load %arg3[%c32, %c0_34] : memref<65x128xf32, #tpu.memory_space<vmem>>, vector<32x128xf32>
    %c64 = arith.constant 64 : index
    %c0_35 = arith.constant 0 : index
    %149 = vector.load %arg3[%c64, %c0_35] : memref<65x128xf32, #tpu.memory_space<vmem>>, vector<1x128xf32>
    %cst_36 = arith.constant dense<0.000000e+00> : vector<64x128xf32>
    %150 = tpu.matmul %146, %147, %cst_36 {dimension_numbers = #tpu.dot_dimension_numbers<[1], [0], [0], [1], [0, 0, 1, 1], [], []>} : vector<64x32xf32>, vector<32x128xf32>, vector<64x128xf32> -> vector<64x128xf32>
    %151 = vector.broadcast %149 : vector<1x128xf32> to vector<64x128xf32>
    %152 = arith.addf %150, %151 : vector<64x128xf32>
    %cst_37 = arith.constant 0.000000e+00 : f32
    %153 = vector.broadcast %cst_37 : f32 to vector<8x32xf32>
    %cst_38 = arith.constant 0.000000e+00 : f32
    %154 = vector.broadcast %cst_38 : f32 to vector<8x32xf32>
    %155 = vector.extract_strided_slice %152 {offsets = [0, 0], sizes = [8, 128], strides = [1, 1]} : vector<64x128xf32> to vector<8x128xf32>
    %cst_39 = arith.constant dense<0.000000e+00> : vector<8x128xf32>
    %156 = tpu.matmul %153, %148, %cst_39 {dimension_numbers = #tpu.dot_dimension_numbers<[1], [0], [0], [1], [0, 0, 1, 1], [], []>} : vector<8x32xf32>, vector<32x128xf32>, vector<8x128xf32> -> vector<8x128xf32>
    %157 = arith.addf %155, %156 : vector<8x128xf32>
    %158 = math.tanh %157 : vector<8x128xf32>
    %cst_40 = arith.constant 5.000000e-01 : f32
    %159 = vector.broadcast %cst_40 : f32 to vector<8x128xf32>
    %160 = arith.mulf %159, %158 : vector<8x128xf32>
    %cst_41 = arith.constant 5.000000e-01 : f32
    %161 = vector.broadcast %cst_41 : f32 to vector<8x128xf32>
    %162 = arith.addf %160, %161 : vector<8x128xf32>
    %163 = vector.extract_strided_slice %162 {offsets = [0, 0], sizes = [8, 32], strides = [1, 1]} : vector<8x128xf32> to vector<8x32xf32>
    %164 = vector.extract_strided_slice %162 {offsets = [0, 32], sizes = [8, 32], strides = [1, 1]} : vector<8x128xf32> to vector<8x32xf32>
    %165 = vector.extract_strided_slice %158 {offsets = [0, 64], sizes = [8, 32], strides = [1, 1]} : vector<8x128xf32> to vector<8x32xf32>
    %166 = vector.extract_strided_slice %162 {offsets = [0, 96], sizes = [8, 32], strides = [1, 1]} : vector<8x128xf32> to vector<8x32xf32>
    %167 = arith.mulf %164, %154 : vector<8x32xf32>
    %168 = arith.mulf %163, %165 : vector<8x32xf32>
    %169 = arith.addf %167, %168 : vector<8x32xf32>
    %170 = math.tanh %169 : vector<8x32xf32>
    %171 = arith.mulf %166, %170 : vector<8x32xf32>
    %172 = vector.extract_strided_slice %152 {offsets = [8, 0], sizes = [8, 128], strides = [1, 1]} : vector<64x128xf32> to vector<8x128xf32>
    %cst_42 = arith.constant dense<0.000000e+00> : vector<8x128xf32>
    %173 = tpu.matmul %171, %148, %cst_42 {dimension_numbers = #tpu.dot_dimension_numbers<[1], [0], [0], [1], [0, 0, 1, 1], [], []>} : vector<8x32xf32>, vector<32x128xf32>, vector<8x128xf32> -> vector<8x128xf32>
    %174 = arith.addf %172, %173 : vector<8x128xf32>
    %175 = math.tanh %174 : vector<8x128xf32>
    %cst_43 = arith.constant 5.000000e-01 : f32
    %176 = vector.broadcast %cst_43 : f32 to vector<8x128xf32>
    %177 = arith.mulf %176, %175 : vector<8x128xf32>
    %cst_44 = arith.constant 5.000000e-01 : f32
    %178 = vector.broadcast %cst_44 : f32 to vector<8x128xf32>
    %179 = arith.addf %177, %178 : vector<8x128xf32>
    %180 = vector.extract_strided_slice %179 {offsets = [0, 0], sizes = [8, 32], strides = [1, 1]} : vector<8x128xf32> to vector<8x32xf32>
    %181 = vector.extract_strided_slice %179 {offsets = [0, 32], sizes = [8, 32], strides = [1, 1]} : vector<8x128xf32> to vector<8x32xf32>
    %182 = vector.extract_strided_slice %175 {offsets = [0, 64], sizes = [8, 32], strides = [1, 1]} : vector<8x128xf32> to vector<8x32xf32>
    %183 = vector.extract_strided_slice %179 {offsets = [0, 96], sizes = [8, 32], strides = [1, 1]} : vector<8x128xf32> to vector<8x32xf32>
    %184 = arith.mulf %181, %169 : vector<8x32xf32>
    %185 = arith.mulf %180, %182 : vector<8x32xf32>
    %186 = arith.addf %184, %185 : vector<8x32xf32>
    %187 = math.tanh %186 : vector<8x32xf32>
    %188 = arith.mulf %183, %187 : vector<8x32xf32>
    %189 = vector.extract_strided_slice %152 {offsets = [16, 0], sizes = [8, 128], strides = [1, 1]} : vector<64x128xf32> to vector<8x128xf32>
    %cst_45 = arith.constant dense<0.000000e+00> : vector<8x128xf32>
    %190 = tpu.matmul %188, %148, %cst_45 {dimension_numbers = #tpu.dot_dimension_numbers<[1], [0], [0], [1], [0, 0, 1, 1], [], []>} : vector<8x32xf32>, vector<32x128xf32>, vector<8x128xf32> -> vector<8x128xf32>
    %191 = arith.addf %189, %190 : vector<8x128xf32>
    %192 = math.tanh %191 : vector<8x128xf32>
    %cst_46 = arith.constant 5.000000e-01 : f32
    %193 = vector.broadcast %cst_46 : f32 to vector<8x128xf32>
    %194 = arith.mulf %193, %192 : vector<8x128xf32>
    %cst_47 = arith.constant 5.000000e-01 : f32
    %195 = vector.broadcast %cst_47 : f32 to vector<8x128xf32>
    %196 = arith.addf %194, %195 : vector<8x128xf32>
    %197 = vector.extract_strided_slice %196 {offsets = [0, 0], sizes = [8, 32], strides = [1, 1]} : vector<8x128xf32> to vector<8x32xf32>
    %198 = vector.extract_strided_slice %196 {offsets = [0, 32], sizes = [8, 32], strides = [1, 1]} : vector<8x128xf32> to vector<8x32xf32>
    %199 = vector.extract_strided_slice %192 {offsets = [0, 64], sizes = [8, 32], strides = [1, 1]} : vector<8x128xf32> to vector<8x32xf32>
    %200 = vector.extract_strided_slice %196 {offsets = [0, 96], sizes = [8, 32], strides = [1, 1]} : vector<8x128xf32> to vector<8x32xf32>
    %201 = arith.mulf %198, %186 : vector<8x32xf32>
    %202 = arith.mulf %197, %199 : vector<8x32xf32>
    %203 = arith.addf %201, %202 : vector<8x32xf32>
    %204 = math.tanh %203 : vector<8x32xf32>
    %205 = arith.mulf %200, %204 : vector<8x32xf32>
    %206 = vector.extract_strided_slice %152 {offsets = [24, 0], sizes = [8, 128], strides = [1, 1]} : vector<64x128xf32> to vector<8x128xf32>
    %cst_48 = arith.constant dense<0.000000e+00> : vector<8x128xf32>
    %207 = tpu.matmul %205, %148, %cst_48 {dimension_numbers = #tpu.dot_dimension_numbers<[1], [0], [0], [1], [0, 0, 1, 1], [], []>} : vector<8x32xf32>, vector<32x128xf32>, vector<8x128xf32> -> vector<8x128xf32>
    %208 = arith.addf %206, %207 : vector<8x128xf32>
    %209 = math.tanh %208 : vector<8x128xf32>
    %cst_49 = arith.constant 5.000000e-01 : f32
    %210 = vector.broadcast %cst_49 : f32 to vector<8x128xf32>
    %211 = arith.mulf %210, %209 : vector<8x128xf32>
    %cst_50 = arith.constant 5.000000e-01 : f32
    %212 = vector.broadcast %cst_50 : f32 to vector<8x128xf32>
    %213 = arith.addf %211, %212 : vector<8x128xf32>
    %214 = vector.extract_strided_slice %213 {offsets = [0, 0], sizes = [8, 32], strides = [1, 1]} : vector<8x128xf32> to vector<8x32xf32>
    %215 = vector.extract_strided_slice %213 {offsets = [0, 32], sizes = [8, 32], strides = [1, 1]} : vector<8x128xf32> to vector<8x32xf32>
    %216 = vector.extract_strided_slice %209 {offsets = [0, 64], sizes = [8, 32], strides = [1, 1]} : vector<8x128xf32> to vector<8x32xf32>
    %217 = vector.extract_strided_slice %213 {offsets = [0, 96], sizes = [8, 32], strides = [1, 1]} : vector<8x128xf32> to vector<8x32xf32>
    %218 = arith.mulf %215, %203 : vector<8x32xf32>
    %219 = arith.mulf %214, %216 : vector<8x32xf32>
    %220 = arith.addf %218, %219 : vector<8x32xf32>
    %221 = math.tanh %220 : vector<8x32xf32>
    %222 = arith.mulf %217, %221 : vector<8x32xf32>
    %223 = vector.extract_strided_slice %152 {offsets = [32, 0], sizes = [8, 128], strides = [1, 1]} : vector<64x128xf32> to vector<8x128xf32>
    %cst_51 = arith.constant dense<0.000000e+00> : vector<8x128xf32>
    %224 = tpu.matmul %222, %148, %cst_51 {dimension_numbers = #tpu.dot_dimension_numbers<[1], [0], [0], [1], [0, 0, 1, 1], [], []>} : vector<8x32xf32>, vector<32x128xf32>, vector<8x128xf32> -> vector<8x128xf32>
    %225 = arith.addf %223, %224 : vector<8x128xf32>
    %226 = math.tanh %225 : vector<8x128xf32>
    %cst_52 = arith.constant 5.000000e-01 : f32
    %227 = vector.broadcast %cst_52 : f32 to vector<8x128xf32>
    %228 = arith.mulf %227, %226 : vector<8x128xf32>
    %cst_53 = arith.constant 5.000000e-01 : f32
    %229 = vector.broadcast %cst_53 : f32 to vector<8x128xf32>
    %230 = arith.addf %228, %229 : vector<8x128xf32>
    %231 = vector.extract_strided_slice %230 {offsets = [0, 0], sizes = [8, 32], strides = [1, 1]} : vector<8x128xf32> to vector<8x32xf32>
    %232 = vector.extract_strided_slice %230 {offsets = [0, 32], sizes = [8, 32], strides = [1, 1]} : vector<8x128xf32> to vector<8x32xf32>
    %233 = vector.extract_strided_slice %226 {offsets = [0, 64], sizes = [8, 32], strides = [1, 1]} : vector<8x128xf32> to vector<8x32xf32>
    %234 = vector.extract_strided_slice %230 {offsets = [0, 96], sizes = [8, 32], strides = [1, 1]} : vector<8x128xf32> to vector<8x32xf32>
    %235 = arith.mulf %232, %220 : vector<8x32xf32>
    %236 = arith.mulf %231, %233 : vector<8x32xf32>
    %237 = arith.addf %235, %236 : vector<8x32xf32>
    %238 = math.tanh %237 : vector<8x32xf32>
    %239 = arith.mulf %234, %238 : vector<8x32xf32>
    %240 = vector.extract_strided_slice %152 {offsets = [40, 0], sizes = [8, 128], strides = [1, 1]} : vector<64x128xf32> to vector<8x128xf32>
    %cst_54 = arith.constant dense<0.000000e+00> : vector<8x128xf32>
    %241 = tpu.matmul %239, %148, %cst_54 {dimension_numbers = #tpu.dot_dimension_numbers<[1], [0], [0], [1], [0, 0, 1, 1], [], []>} : vector<8x32xf32>, vector<32x128xf32>, vector<8x128xf32> -> vector<8x128xf32>
    %242 = arith.addf %240, %241 : vector<8x128xf32>
    %243 = math.tanh %242 : vector<8x128xf32>
    %cst_55 = arith.constant 5.000000e-01 : f32
    %244 = vector.broadcast %cst_55 : f32 to vector<8x128xf32>
    %245 = arith.mulf %244, %243 : vector<8x128xf32>
    %cst_56 = arith.constant 5.000000e-01 : f32
    %246 = vector.broadcast %cst_56 : f32 to vector<8x128xf32>
    %247 = arith.addf %245, %246 : vector<8x128xf32>
    %248 = vector.extract_strided_slice %247 {offsets = [0, 0], sizes = [8, 32], strides = [1, 1]} : vector<8x128xf32> to vector<8x32xf32>
    %249 = vector.extract_strided_slice %247 {offsets = [0, 32], sizes = [8, 32], strides = [1, 1]} : vector<8x128xf32> to vector<8x32xf32>
    %250 = vector.extract_strided_slice %243 {offsets = [0, 64], sizes = [8, 32], strides = [1, 1]} : vector<8x128xf32> to vector<8x32xf32>
    %251 = vector.extract_strided_slice %247 {offsets = [0, 96], sizes = [8, 32], strides = [1, 1]} : vector<8x128xf32> to vector<8x32xf32>
    %252 = arith.mulf %249, %237 : vector<8x32xf32>
    %253 = arith.mulf %248, %250 : vector<8x32xf32>
    %254 = arith.addf %252, %253 : vector<8x32xf32>
    %255 = math.tanh %254 : vector<8x32xf32>
    %256 = arith.mulf %251, %255 : vector<8x32xf32>
    %257 = vector.extract_strided_slice %152 {offsets = [48, 0], sizes = [8, 128], strides = [1, 1]} : vector<64x128xf32> to vector<8x128xf32>
    %cst_57 = arith.constant dense<0.000000e+00> : vector<8x128xf32>
    %258 = tpu.matmul %256, %148, %cst_57 {dimension_numbers = #tpu.dot_dimension_numbers<[1], [0], [0], [1], [0, 0, 1, 1], [], []>} : vector<8x32xf32>, vector<32x128xf32>, vector<8x128xf32> -> vector<8x128xf32>
    %259 = arith.addf %257, %258 : vector<8x128xf32>
    %260 = math.tanh %259 : vector<8x128xf32>
    %cst_58 = arith.constant 5.000000e-01 : f32
    %261 = vector.broadcast %cst_58 : f32 to vector<8x128xf32>
    %262 = arith.mulf %261, %260 : vector<8x128xf32>
    %cst_59 = arith.constant 5.000000e-01 : f32
    %263 = vector.broadcast %cst_59 : f32 to vector<8x128xf32>
    %264 = arith.addf %262, %263 : vector<8x128xf32>
    %265 = vector.extract_strided_slice %264 {offsets = [0, 0], sizes = [8, 32], strides = [1, 1]} : vector<8x128xf32> to vector<8x32xf32>
    %266 = vector.extract_strided_slice %264 {offsets = [0, 32], sizes = [8, 32], strides = [1, 1]} : vector<8x128xf32> to vector<8x32xf32>
    %267 = vector.extract_strided_slice %260 {offsets = [0, 64], sizes = [8, 32], strides = [1, 1]} : vector<8x128xf32> to vector<8x32xf32>
    %268 = vector.extract_strided_slice %264 {offsets = [0, 96], sizes = [8, 32], strides = [1, 1]} : vector<8x128xf32> to vector<8x32xf32>
    %269 = arith.mulf %266, %254 : vector<8x32xf32>
    %270 = arith.mulf %265, %267 : vector<8x32xf32>
    %271 = arith.addf %269, %270 : vector<8x32xf32>
    %272 = math.tanh %271 : vector<8x32xf32>
    %273 = arith.mulf %268, %272 : vector<8x32xf32>
    %274 = vector.extract_strided_slice %152 {offsets = [56, 0], sizes = [8, 128], strides = [1, 1]} : vector<64x128xf32> to vector<8x128xf32>
    %cst_60 = arith.constant dense<0.000000e+00> : vector<8x128xf32>
    %275 = tpu.matmul %273, %148, %cst_60 {dimension_numbers = #tpu.dot_dimension_numbers<[1], [0], [0], [1], [0, 0, 1, 1], [], []>} : vector<8x32xf32>, vector<32x128xf32>, vector<8x128xf32> -> vector<8x128xf32>
    %276 = arith.addf %274, %275 : vector<8x128xf32>
    %277 = math.tanh %276 : vector<8x128xf32>
    %cst_61 = arith.constant 5.000000e-01 : f32
    %278 = vector.broadcast %cst_61 : f32 to vector<8x128xf32>
    %279 = arith.mulf %278, %277 : vector<8x128xf32>
    %cst_62 = arith.constant 5.000000e-01 : f32
    %280 = vector.broadcast %cst_62 : f32 to vector<8x128xf32>
    %281 = arith.addf %279, %280 : vector<8x128xf32>
    %282 = vector.extract_strided_slice %281 {offsets = [0, 0], sizes = [8, 32], strides = [1, 1]} : vector<8x128xf32> to vector<8x32xf32>
    %283 = vector.extract_strided_slice %281 {offsets = [0, 32], sizes = [8, 32], strides = [1, 1]} : vector<8x128xf32> to vector<8x32xf32>
    %284 = vector.extract_strided_slice %277 {offsets = [0, 64], sizes = [8, 32], strides = [1, 1]} : vector<8x128xf32> to vector<8x32xf32>
    %285 = vector.extract_strided_slice %281 {offsets = [0, 96], sizes = [8, 32], strides = [1, 1]} : vector<8x128xf32> to vector<8x32xf32>
    %286 = arith.mulf %283, %271 : vector<8x32xf32>
    %287 = arith.mulf %282, %284 : vector<8x32xf32>
    %288 = arith.addf %286, %287 : vector<8x32xf32>
    %289 = math.tanh %288 : vector<8x32xf32>
    %290 = arith.mulf %285, %289 : vector<8x32xf32>
    %c0_63 = arith.constant 0 : index
    %c0_64 = arith.constant 0 : index
    %291 = vector.load %arg4[%c0_63, %c0_64] : memref<65x128xf32, #tpu.memory_space<vmem>>, vector<32x128xf32>
    %c32_65 = arith.constant 32 : index
    %c0_66 = arith.constant 0 : index
    %292 = vector.load %arg4[%c32_65, %c0_66] : memref<65x128xf32, #tpu.memory_space<vmem>>, vector<32x128xf32>
    %c64_67 = arith.constant 64 : index
    %c0_68 = arith.constant 0 : index
    %293 = vector.load %arg4[%c64_67, %c0_68] : memref<65x128xf32, #tpu.memory_space<vmem>>, vector<1x128xf32>
    %cst_69 = arith.constant dense<0.000000e+00> : vector<8x128xf32>
    %294 = tpu.matmul %290, %291, %cst_69 {dimension_numbers = #tpu.dot_dimension_numbers<[1], [0], [0], [1], [0, 0, 1, 1], [], []>} : vector<8x32xf32>, vector<32x128xf32>, vector<8x128xf32> -> vector<8x128xf32>
    %295 = vector.broadcast %293 : vector<1x128xf32> to vector<8x128xf32>
    %296 = arith.addf %294, %295 : vector<8x128xf32>
    %cst_70 = arith.constant 0.000000e+00 : f32
    %297 = vector.broadcast %cst_70 : f32 to vector<8x32xf32>
    %cst_71 = arith.constant 0.000000e+00 : f32
    %298 = vector.broadcast %cst_71 : f32 to vector<8x32xf32>
    %cst_72 = arith.constant dense<0.000000e+00> : vector<8x128xf32>
    %299 = tpu.matmul %297, %292, %cst_72 {dimension_numbers = #tpu.dot_dimension_numbers<[1], [0], [0], [1], [0, 0, 1, 1], [], []>} : vector<8x32xf32>, vector<32x128xf32>, vector<8x128xf32> -> vector<8x128xf32>
    %300 = arith.addf %296, %299 : vector<8x128xf32>
    %301 = math.tanh %300 : vector<8x128xf32>
    %cst_73 = arith.constant 5.000000e-01 : f32
    %302 = vector.broadcast %cst_73 : f32 to vector<8x128xf32>
    %303 = arith.mulf %302, %301 : vector<8x128xf32>
    %cst_74 = arith.constant 5.000000e-01 : f32
    %304 = vector.broadcast %cst_74 : f32 to vector<8x128xf32>
    %305 = arith.addf %303, %304 : vector<8x128xf32>
    %306 = vector.extract_strided_slice %305 {offsets = [0, 0], sizes = [8, 32], strides = [1, 1]} : vector<8x128xf32> to vector<8x32xf32>
    %307 = vector.extract_strided_slice %305 {offsets = [0, 32], sizes = [8, 32], strides = [1, 1]} : vector<8x128xf32> to vector<8x32xf32>
    %308 = vector.extract_strided_slice %301 {offsets = [0, 64], sizes = [8, 32], strides = [1, 1]} : vector<8x128xf32> to vector<8x32xf32>
    %309 = vector.extract_strided_slice %305 {offsets = [0, 96], sizes = [8, 32], strides = [1, 1]} : vector<8x128xf32> to vector<8x32xf32>
    %310 = arith.mulf %307, %298 : vector<8x32xf32>
    %311 = arith.mulf %306, %308 : vector<8x32xf32>
    %312 = arith.addf %310, %311 : vector<8x32xf32>
    %313 = math.tanh %312 : vector<8x32xf32>
    %314 = arith.mulf %309, %313 : vector<8x32xf32>
    %cst_75 = arith.constant dense<0.000000e+00> : vector<8x128xf32>
    %315 = tpu.matmul %314, %292, %cst_75 {dimension_numbers = #tpu.dot_dimension_numbers<[1], [0], [0], [1], [0, 0, 1, 1], [], []>} : vector<8x32xf32>, vector<32x128xf32>, vector<8x128xf32> -> vector<8x128xf32>
    %316 = arith.addf %296, %315 : vector<8x128xf32>
    %317 = math.tanh %316 : vector<8x128xf32>
    %cst_76 = arith.constant 5.000000e-01 : f32
    %318 = vector.broadcast %cst_76 : f32 to vector<8x128xf32>
    %319 = arith.mulf %318, %317 : vector<8x128xf32>
    %cst_77 = arith.constant 5.000000e-01 : f32
    %320 = vector.broadcast %cst_77 : f32 to vector<8x128xf32>
    %321 = arith.addf %319, %320 : vector<8x128xf32>
    %322 = vector.extract_strided_slice %321 {offsets = [0, 0], sizes = [8, 32], strides = [1, 1]} : vector<8x128xf32> to vector<8x32xf32>
    %323 = vector.extract_strided_slice %321 {offsets = [0, 32], sizes = [8, 32], strides = [1, 1]} : vector<8x128xf32> to vector<8x32xf32>
    %324 = vector.extract_strided_slice %317 {offsets = [0, 64], sizes = [8, 32], strides = [1, 1]} : vector<8x128xf32> to vector<8x32xf32>
    %325 = vector.extract_strided_slice %321 {offsets = [0, 96], sizes = [8, 32], strides = [1, 1]} : vector<8x128xf32> to vector<8x32xf32>
    %326 = arith.mulf %323, %312 : vector<8x32xf32>
    %327 = arith.mulf %322, %324 : vector<8x32xf32>
    %328 = arith.addf %326, %327 : vector<8x32xf32>
    %329 = math.tanh %328 : vector<8x32xf32>
    %330 = arith.mulf %325, %329 : vector<8x32xf32>
    %cst_78 = arith.constant dense<0.000000e+00> : vector<8x128xf32>
    %331 = tpu.matmul %330, %292, %cst_78 {dimension_numbers = #tpu.dot_dimension_numbers<[1], [0], [0], [1], [0, 0, 1, 1], [], []>} : vector<8x32xf32>, vector<32x128xf32>, vector<8x128xf32> -> vector<8x128xf32>
    %332 = arith.addf %296, %331 : vector<8x128xf32>
    %333 = math.tanh %332 : vector<8x128xf32>
    %cst_79 = arith.constant 5.000000e-01 : f32
    %334 = vector.broadcast %cst_79 : f32 to vector<8x128xf32>
    %335 = arith.mulf %334, %333 : vector<8x128xf32>
    %cst_80 = arith.constant 5.000000e-01 : f32
    %336 = vector.broadcast %cst_80 : f32 to vector<8x128xf32>
    %337 = arith.addf %335, %336 : vector<8x128xf32>
    %338 = vector.extract_strided_slice %337 {offsets = [0, 0], sizes = [8, 32], strides = [1, 1]} : vector<8x128xf32> to vector<8x32xf32>
    %339 = vector.extract_strided_slice %337 {offsets = [0, 32], sizes = [8, 32], strides = [1, 1]} : vector<8x128xf32> to vector<8x32xf32>
    %340 = vector.extract_strided_slice %333 {offsets = [0, 64], sizes = [8, 32], strides = [1, 1]} : vector<8x128xf32> to vector<8x32xf32>
    %341 = vector.extract_strided_slice %337 {offsets = [0, 96], sizes = [8, 32], strides = [1, 1]} : vector<8x128xf32> to vector<8x32xf32>
    %342 = arith.mulf %339, %328 : vector<8x32xf32>
    %343 = arith.mulf %338, %340 : vector<8x32xf32>
    %344 = arith.addf %342, %343 : vector<8x32xf32>
    %345 = math.tanh %344 : vector<8x32xf32>
    %346 = arith.mulf %341, %345 : vector<8x32xf32>
    %cst_81 = arith.constant dense<0.000000e+00> : vector<8x128xf32>
    %347 = tpu.matmul %346, %292, %cst_81 {dimension_numbers = #tpu.dot_dimension_numbers<[1], [0], [0], [1], [0, 0, 1, 1], [], []>} : vector<8x32xf32>, vector<32x128xf32>, vector<8x128xf32> -> vector<8x128xf32>
    %348 = arith.addf %296, %347 : vector<8x128xf32>
    %349 = math.tanh %348 : vector<8x128xf32>
    %cst_82 = arith.constant 5.000000e-01 : f32
    %350 = vector.broadcast %cst_82 : f32 to vector<8x128xf32>
    %351 = arith.mulf %350, %349 : vector<8x128xf32>
    %cst_83 = arith.constant 5.000000e-01 : f32
    %352 = vector.broadcast %cst_83 : f32 to vector<8x128xf32>
    %353 = arith.addf %351, %352 : vector<8x128xf32>
    %354 = vector.extract_strided_slice %353 {offsets = [0, 0], sizes = [8, 32], strides = [1, 1]} : vector<8x128xf32> to vector<8x32xf32>
    %355 = vector.extract_strided_slice %353 {offsets = [0, 32], sizes = [8, 32], strides = [1, 1]} : vector<8x128xf32> to vector<8x32xf32>
    %356 = vector.extract_strided_slice %349 {offsets = [0, 64], sizes = [8, 32], strides = [1, 1]} : vector<8x128xf32> to vector<8x32xf32>
    %357 = vector.extract_strided_slice %353 {offsets = [0, 96], sizes = [8, 32], strides = [1, 1]} : vector<8x128xf32> to vector<8x32xf32>
    %358 = arith.mulf %355, %344 : vector<8x32xf32>
    %359 = arith.mulf %354, %356 : vector<8x32xf32>
    %360 = arith.addf %358, %359 : vector<8x32xf32>
    %361 = math.tanh %360 : vector<8x32xf32>
    %362 = arith.mulf %357, %361 : vector<8x32xf32>
    %cst_84 = arith.constant dense<0.000000e+00> : vector<8x128xf32>
    %363 = tpu.matmul %362, %292, %cst_84 {dimension_numbers = #tpu.dot_dimension_numbers<[1], [0], [0], [1], [0, 0, 1, 1], [], []>} : vector<8x32xf32>, vector<32x128xf32>, vector<8x128xf32> -> vector<8x128xf32>
    %364 = arith.addf %296, %363 : vector<8x128xf32>
    %365 = math.tanh %364 : vector<8x128xf32>
    %cst_85 = arith.constant 5.000000e-01 : f32
    %366 = vector.broadcast %cst_85 : f32 to vector<8x128xf32>
    %367 = arith.mulf %366, %365 : vector<8x128xf32>
    %cst_86 = arith.constant 5.000000e-01 : f32
    %368 = vector.broadcast %cst_86 : f32 to vector<8x128xf32>
    %369 = arith.addf %367, %368 : vector<8x128xf32>
    %370 = vector.extract_strided_slice %369 {offsets = [0, 0], sizes = [8, 32], strides = [1, 1]} : vector<8x128xf32> to vector<8x32xf32>
    %371 = vector.extract_strided_slice %369 {offsets = [0, 32], sizes = [8, 32], strides = [1, 1]} : vector<8x128xf32> to vector<8x32xf32>
    %372 = vector.extract_strided_slice %365 {offsets = [0, 64], sizes = [8, 32], strides = [1, 1]} : vector<8x128xf32> to vector<8x32xf32>
    %373 = vector.extract_strided_slice %369 {offsets = [0, 96], sizes = [8, 32], strides = [1, 1]} : vector<8x128xf32> to vector<8x32xf32>
    %374 = arith.mulf %371, %360 : vector<8x32xf32>
    %375 = arith.mulf %370, %372 : vector<8x32xf32>
    %376 = arith.addf %374, %375 : vector<8x32xf32>
    %377 = math.tanh %376 : vector<8x32xf32>
    %378 = arith.mulf %373, %377 : vector<8x32xf32>
    %cst_87 = arith.constant dense<0.000000e+00> : vector<8x128xf32>
    %379 = tpu.matmul %378, %292, %cst_87 {dimension_numbers = #tpu.dot_dimension_numbers<[1], [0], [0], [1], [0, 0, 1, 1], [], []>} : vector<8x32xf32>, vector<32x128xf32>, vector<8x128xf32> -> vector<8x128xf32>
    %380 = arith.addf %296, %379 : vector<8x128xf32>
    %381 = math.tanh %380 : vector<8x128xf32>
    %cst_88 = arith.constant 5.000000e-01 : f32
    %382 = vector.broadcast %cst_88 : f32 to vector<8x128xf32>
    %383 = arith.mulf %382, %381 : vector<8x128xf32>
    %cst_89 = arith.constant 5.000000e-01 : f32
    %384 = vector.broadcast %cst_89 : f32 to vector<8x128xf32>
    %385 = arith.addf %383, %384 : vector<8x128xf32>
    %386 = vector.extract_strided_slice %385 {offsets = [0, 0], sizes = [8, 32], strides = [1, 1]} : vector<8x128xf32> to vector<8x32xf32>
    %387 = vector.extract_strided_slice %385 {offsets = [0, 32], sizes = [8, 32], strides = [1, 1]} : vector<8x128xf32> to vector<8x32xf32>
    %388 = vector.extract_strided_slice %381 {offsets = [0, 64], sizes = [8, 32], strides = [1, 1]} : vector<8x128xf32> to vector<8x32xf32>
    %389 = vector.extract_strided_slice %385 {offsets = [0, 96], sizes = [8, 32], strides = [1, 1]} : vector<8x128xf32> to vector<8x32xf32>
    %390 = arith.mulf %387, %376 : vector<8x32xf32>
    %391 = arith.mulf %386, %388 : vector<8x32xf32>
    %392 = arith.addf %390, %391 : vector<8x32xf32>
    %393 = math.tanh %392 : vector<8x32xf32>
    %394 = arith.mulf %389, %393 : vector<8x32xf32>
    %cst_90 = arith.constant dense<0.000000e+00> : vector<8x128xf32>
    %395 = tpu.matmul %394, %292, %cst_90 {dimension_numbers = #tpu.dot_dimension_numbers<[1], [0], [0], [1], [0, 0, 1, 1], [], []>} : vector<8x32xf32>, vector<32x128xf32>, vector<8x128xf32> -> vector<8x128xf32>
    %396 = arith.addf %296, %395 : vector<8x128xf32>
    %397 = math.tanh %396 : vector<8x128xf32>
    %cst_91 = arith.constant 5.000000e-01 : f32
    %398 = vector.broadcast %cst_91 : f32 to vector<8x128xf32>
    %399 = arith.mulf %398, %397 : vector<8x128xf32>
    %cst_92 = arith.constant 5.000000e-01 : f32
    %400 = vector.broadcast %cst_92 : f32 to vector<8x128xf32>
    %401 = arith.addf %399, %400 : vector<8x128xf32>
    %402 = vector.extract_strided_slice %401 {offsets = [0, 0], sizes = [8, 32], strides = [1, 1]} : vector<8x128xf32> to vector<8x32xf32>
    %403 = vector.extract_strided_slice %401 {offsets = [0, 32], sizes = [8, 32], strides = [1, 1]} : vector<8x128xf32> to vector<8x32xf32>
    %404 = vector.extract_strided_slice %397 {offsets = [0, 64], sizes = [8, 32], strides = [1, 1]} : vector<8x128xf32> to vector<8x32xf32>
    %405 = vector.extract_strided_slice %401 {offsets = [0, 96], sizes = [8, 32], strides = [1, 1]} : vector<8x128xf32> to vector<8x32xf32>
    %406 = arith.mulf %403, %392 : vector<8x32xf32>
    %407 = arith.mulf %402, %404 : vector<8x32xf32>
    %408 = arith.addf %406, %407 : vector<8x32xf32>
    %409 = math.tanh %408 : vector<8x32xf32>
    %410 = arith.mulf %405, %409 : vector<8x32xf32>
    %cst_93 = arith.constant dense<0.000000e+00> : vector<8x128xf32>
    %411 = tpu.matmul %410, %292, %cst_93 {dimension_numbers = #tpu.dot_dimension_numbers<[1], [0], [0], [1], [0, 0, 1, 1], [], []>} : vector<8x32xf32>, vector<32x128xf32>, vector<8x128xf32> -> vector<8x128xf32>
    %412 = arith.addf %296, %411 : vector<8x128xf32>
    %413 = math.tanh %412 : vector<8x128xf32>
    %cst_94 = arith.constant 5.000000e-01 : f32
    %414 = vector.broadcast %cst_94 : f32 to vector<8x128xf32>
    %415 = arith.mulf %414, %413 : vector<8x128xf32>
    %cst_95 = arith.constant 5.000000e-01 : f32
    %416 = vector.broadcast %cst_95 : f32 to vector<8x128xf32>
    %417 = arith.addf %415, %416 : vector<8x128xf32>
    %418 = vector.extract_strided_slice %417 {offsets = [0, 0], sizes = [8, 32], strides = [1, 1]} : vector<8x128xf32> to vector<8x32xf32>
    %419 = vector.extract_strided_slice %417 {offsets = [0, 32], sizes = [8, 32], strides = [1, 1]} : vector<8x128xf32> to vector<8x32xf32>
    %420 = vector.extract_strided_slice %413 {offsets = [0, 64], sizes = [8, 32], strides = [1, 1]} : vector<8x128xf32> to vector<8x32xf32>
    %421 = vector.extract_strided_slice %417 {offsets = [0, 96], sizes = [8, 32], strides = [1, 1]} : vector<8x128xf32> to vector<8x32xf32>
    %422 = arith.mulf %419, %408 : vector<8x32xf32>
    %423 = arith.mulf %418, %420 : vector<8x32xf32>
    %424 = arith.addf %422, %423 : vector<8x32xf32>
    %425 = math.tanh %424 : vector<8x32xf32>
    %426 = arith.mulf %421, %425 : vector<8x32xf32>
    %427 = tpu.concatenate %314, %330, %346, %362, %378, %394, %410, %426 in 0 : vector<8x32xf32>, vector<8x32xf32>, vector<8x32xf32>, vector<8x32xf32>, vector<8x32xf32>, vector<8x32xf32>, vector<8x32xf32>, vector<8x32xf32> -> vector<64x32xf32>
    %c0_96 = arith.constant 0 : index
    %c0_97 = arith.constant 0 : index
    %428 = vector.load %arg5[%c0_96, %c0_97] : memref<65x128xf32, #tpu.memory_space<vmem>>, vector<32x128xf32>
    %c32_98 = arith.constant 32 : index
    %c0_99 = arith.constant 0 : index
    %429 = vector.load %arg5[%c32_98, %c0_99] : memref<65x128xf32, #tpu.memory_space<vmem>>, vector<32x128xf32>
    %c64_100 = arith.constant 64 : index
    %c0_101 = arith.constant 0 : index
    %430 = vector.load %arg5[%c64_100, %c0_101] : memref<65x128xf32, #tpu.memory_space<vmem>>, vector<1x128xf32>
    %cst_102 = arith.constant dense<0.000000e+00> : vector<64x128xf32>
    %431 = tpu.matmul %427, %428, %cst_102 {dimension_numbers = #tpu.dot_dimension_numbers<[1], [0], [0], [1], [0, 0, 1, 1], [], []>} : vector<64x32xf32>, vector<32x128xf32>, vector<64x128xf32> -> vector<64x128xf32>
    %432 = vector.broadcast %430 : vector<1x128xf32> to vector<64x128xf32>
    %433 = arith.addf %431, %432 : vector<64x128xf32>
    %cst_103 = arith.constant 0.000000e+00 : f32
    %434 = vector.broadcast %cst_103 : f32 to vector<8x32xf32>
    %cst_104 = arith.constant 0.000000e+00 : f32
    %435 = vector.broadcast %cst_104 : f32 to vector<8x32xf32>
    %436 = vector.extract_strided_slice %433 {offsets = [0, 0], sizes = [8, 128], strides = [1, 1]} : vector<64x128xf32> to vector<8x128xf32>
    %cst_105 = arith.constant dense<0.000000e+00> : vector<8x128xf32>
    %437 = tpu.matmul %434, %429, %cst_105 {dimension_numbers = #tpu.dot_dimension_numbers<[1], [0], [0], [1], [0, 0, 1, 1], [], []>} : vector<8x32xf32>, vector<32x128xf32>, vector<8x128xf32> -> vector<8x128xf32>
    %438 = arith.addf %436, %437 : vector<8x128xf32>
    %439 = math.tanh %438 : vector<8x128xf32>
    %cst_106 = arith.constant 5.000000e-01 : f32
    %440 = vector.broadcast %cst_106 : f32 to vector<8x128xf32>
    %441 = arith.mulf %440, %439 : vector<8x128xf32>
    %cst_107 = arith.constant 5.000000e-01 : f32
    %442 = vector.broadcast %cst_107 : f32 to vector<8x128xf32>
    %443 = arith.addf %441, %442 : vector<8x128xf32>
    %444 = vector.extract_strided_slice %443 {offsets = [0, 0], sizes = [8, 32], strides = [1, 1]} : vector<8x128xf32> to vector<8x32xf32>
    %445 = vector.extract_strided_slice %443 {offsets = [0, 32], sizes = [8, 32], strides = [1, 1]} : vector<8x128xf32> to vector<8x32xf32>
    %446 = vector.extract_strided_slice %439 {offsets = [0, 64], sizes = [8, 32], strides = [1, 1]} : vector<8x128xf32> to vector<8x32xf32>
    %447 = vector.extract_strided_slice %443 {offsets = [0, 96], sizes = [8, 32], strides = [1, 1]} : vector<8x128xf32> to vector<8x32xf32>
    %448 = arith.mulf %445, %435 : vector<8x32xf32>
    %449 = arith.mulf %444, %446 : vector<8x32xf32>
    %450 = arith.addf %448, %449 : vector<8x32xf32>
    %451 = math.tanh %450 : vector<8x32xf32>
    %452 = arith.mulf %447, %451 : vector<8x32xf32>
    %453 = vector.extract_strided_slice %433 {offsets = [8, 0], sizes = [8, 128], strides = [1, 1]} : vector<64x128xf32> to vector<8x128xf32>
    %cst_108 = arith.constant dense<0.000000e+00> : vector<8x128xf32>
    %454 = tpu.matmul %452, %429, %cst_108 {dimension_numbers = #tpu.dot_dimension_numbers<[1], [0], [0], [1], [0, 0, 1, 1], [], []>} : vector<8x32xf32>, vector<32x128xf32>, vector<8x128xf32> -> vector<8x128xf32>
    %455 = arith.addf %453, %454 : vector<8x128xf32>
    %456 = math.tanh %455 : vector<8x128xf32>
    %cst_109 = arith.constant 5.000000e-01 : f32
    %457 = vector.broadcast %cst_109 : f32 to vector<8x128xf32>
    %458 = arith.mulf %457, %456 : vector<8x128xf32>
    %cst_110 = arith.constant 5.000000e-01 : f32
    %459 = vector.broadcast %cst_110 : f32 to vector<8x128xf32>
    %460 = arith.addf %458, %459 : vector<8x128xf32>
    %461 = vector.extract_strided_slice %460 {offsets = [0, 0], sizes = [8, 32], strides = [1, 1]} : vector<8x128xf32> to vector<8x32xf32>
    %462 = vector.extract_strided_slice %460 {offsets = [0, 32], sizes = [8, 32], strides = [1, 1]} : vector<8x128xf32> to vector<8x32xf32>
    %463 = vector.extract_strided_slice %456 {offsets = [0, 64], sizes = [8, 32], strides = [1, 1]} : vector<8x128xf32> to vector<8x32xf32>
    %464 = vector.extract_strided_slice %460 {offsets = [0, 96], sizes = [8, 32], strides = [1, 1]} : vector<8x128xf32> to vector<8x32xf32>
    %465 = arith.mulf %462, %450 : vector<8x32xf32>
    %466 = arith.mulf %461, %463 : vector<8x32xf32>
    %467 = arith.addf %465, %466 : vector<8x32xf32>
    %468 = math.tanh %467 : vector<8x32xf32>
    %469 = arith.mulf %464, %468 : vector<8x32xf32>
    %470 = vector.extract_strided_slice %433 {offsets = [16, 0], sizes = [8, 128], strides = [1, 1]} : vector<64x128xf32> to vector<8x128xf32>
    %cst_111 = arith.constant dense<0.000000e+00> : vector<8x128xf32>
    %471 = tpu.matmul %469, %429, %cst_111 {dimension_numbers = #tpu.dot_dimension_numbers<[1], [0], [0], [1], [0, 0, 1, 1], [], []>} : vector<8x32xf32>, vector<32x128xf32>, vector<8x128xf32> -> vector<8x128xf32>
    %472 = arith.addf %470, %471 : vector<8x128xf32>
    %473 = math.tanh %472 : vector<8x128xf32>
    %cst_112 = arith.constant 5.000000e-01 : f32
    %474 = vector.broadcast %cst_112 : f32 to vector<8x128xf32>
    %475 = arith.mulf %474, %473 : vector<8x128xf32>
    %cst_113 = arith.constant 5.000000e-01 : f32
    %476 = vector.broadcast %cst_113 : f32 to vector<8x128xf32>
    %477 = arith.addf %475, %476 : vector<8x128xf32>
    %478 = vector.extract_strided_slice %477 {offsets = [0, 0], sizes = [8, 32], strides = [1, 1]} : vector<8x128xf32> to vector<8x32xf32>
    %479 = vector.extract_strided_slice %477 {offsets = [0, 32], sizes = [8, 32], strides = [1, 1]} : vector<8x128xf32> to vector<8x32xf32>
    %480 = vector.extract_strided_slice %473 {offsets = [0, 64], sizes = [8, 32], strides = [1, 1]} : vector<8x128xf32> to vector<8x32xf32>
    %481 = vector.extract_strided_slice %477 {offsets = [0, 96], sizes = [8, 32], strides = [1, 1]} : vector<8x128xf32> to vector<8x32xf32>
    %482 = arith.mulf %479, %467 : vector<8x32xf32>
    %483 = arith.mulf %478, %480 : vector<8x32xf32>
    %484 = arith.addf %482, %483 : vector<8x32xf32>
    %485 = math.tanh %484 : vector<8x32xf32>
    %486 = arith.mulf %481, %485 : vector<8x32xf32>
    %487 = vector.extract_strided_slice %433 {offsets = [24, 0], sizes = [8, 128], strides = [1, 1]} : vector<64x128xf32> to vector<8x128xf32>
    %cst_114 = arith.constant dense<0.000000e+00> : vector<8x128xf32>
    %488 = tpu.matmul %486, %429, %cst_114 {dimension_numbers = #tpu.dot_dimension_numbers<[1], [0], [0], [1], [0, 0, 1, 1], [], []>} : vector<8x32xf32>, vector<32x128xf32>, vector<8x128xf32> -> vector<8x128xf32>
    %489 = arith.addf %487, %488 : vector<8x128xf32>
    %490 = math.tanh %489 : vector<8x128xf32>
    %cst_115 = arith.constant 5.000000e-01 : f32
    %491 = vector.broadcast %cst_115 : f32 to vector<8x128xf32>
    %492 = arith.mulf %491, %490 : vector<8x128xf32>
    %cst_116 = arith.constant 5.000000e-01 : f32
    %493 = vector.broadcast %cst_116 : f32 to vector<8x128xf32>
    %494 = arith.addf %492, %493 : vector<8x128xf32>
    %495 = vector.extract_strided_slice %494 {offsets = [0, 0], sizes = [8, 32], strides = [1, 1]} : vector<8x128xf32> to vector<8x32xf32>
    %496 = vector.extract_strided_slice %494 {offsets = [0, 32], sizes = [8, 32], strides = [1, 1]} : vector<8x128xf32> to vector<8x32xf32>
    %497 = vector.extract_strided_slice %490 {offsets = [0, 64], sizes = [8, 32], strides = [1, 1]} : vector<8x128xf32> to vector<8x32xf32>
    %498 = vector.extract_strided_slice %494 {offsets = [0, 96], sizes = [8, 32], strides = [1, 1]} : vector<8x128xf32> to vector<8x32xf32>
    %499 = arith.mulf %496, %484 : vector<8x32xf32>
    %500 = arith.mulf %495, %497 : vector<8x32xf32>
    %501 = arith.addf %499, %500 : vector<8x32xf32>
    %502 = math.tanh %501 : vector<8x32xf32>
    %503 = arith.mulf %498, %502 : vector<8x32xf32>
    %504 = vector.extract_strided_slice %433 {offsets = [32, 0], sizes = [8, 128], strides = [1, 1]} : vector<64x128xf32> to vector<8x128xf32>
    %cst_117 = arith.constant dense<0.000000e+00> : vector<8x128xf32>
    %505 = tpu.matmul %503, %429, %cst_117 {dimension_numbers = #tpu.dot_dimension_numbers<[1], [0], [0], [1], [0, 0, 1, 1], [], []>} : vector<8x32xf32>, vector<32x128xf32>, vector<8x128xf32> -> vector<8x128xf32>
    %506 = arith.addf %504, %505 : vector<8x128xf32>
    %507 = math.tanh %506 : vector<8x128xf32>
    %cst_118 = arith.constant 5.000000e-01 : f32
    %508 = vector.broadcast %cst_118 : f32 to vector<8x128xf32>
    %509 = arith.mulf %508, %507 : vector<8x128xf32>
    %cst_119 = arith.constant 5.000000e-01 : f32
    %510 = vector.broadcast %cst_119 : f32 to vector<8x128xf32>
    %511 = arith.addf %509, %510 : vector<8x128xf32>
    %512 = vector.extract_strided_slice %511 {offsets = [0, 0], sizes = [8, 32], strides = [1, 1]} : vector<8x128xf32> to vector<8x32xf32>
    %513 = vector.extract_strided_slice %511 {offsets = [0, 32], sizes = [8, 32], strides = [1, 1]} : vector<8x128xf32> to vector<8x32xf32>
    %514 = vector.extract_strided_slice %507 {offsets = [0, 64], sizes = [8, 32], strides = [1, 1]} : vector<8x128xf32> to vector<8x32xf32>
    %515 = vector.extract_strided_slice %511 {offsets = [0, 96], sizes = [8, 32], strides = [1, 1]} : vector<8x128xf32> to vector<8x32xf32>
    %516 = arith.mulf %513, %501 : vector<8x32xf32>
    %517 = arith.mulf %512, %514 : vector<8x32xf32>
    %518 = arith.addf %516, %517 : vector<8x32xf32>
    %519 = math.tanh %518 : vector<8x32xf32>
    %520 = arith.mulf %515, %519 : vector<8x32xf32>
    %521 = vector.extract_strided_slice %433 {offsets = [40, 0], sizes = [8, 128], strides = [1, 1]} : vector<64x128xf32> to vector<8x128xf32>
    %cst_120 = arith.constant dense<0.000000e+00> : vector<8x128xf32>
    %522 = tpu.matmul %520, %429, %cst_120 {dimension_numbers = #tpu.dot_dimension_numbers<[1], [0], [0], [1], [0, 0, 1, 1], [], []>} : vector<8x32xf32>, vector<32x128xf32>, vector<8x128xf32> -> vector<8x128xf32>
    %523 = arith.addf %521, %522 : vector<8x128xf32>
    %524 = math.tanh %523 : vector<8x128xf32>
    %cst_121 = arith.constant 5.000000e-01 : f32
    %525 = vector.broadcast %cst_121 : f32 to vector<8x128xf32>
    %526 = arith.mulf %525, %524 : vector<8x128xf32>
    %cst_122 = arith.constant 5.000000e-01 : f32
    %527 = vector.broadcast %cst_122 : f32 to vector<8x128xf32>
    %528 = arith.addf %526, %527 : vector<8x128xf32>
    %529 = vector.extract_strided_slice %528 {offsets = [0, 0], sizes = [8, 32], strides = [1, 1]} : vector<8x128xf32> to vector<8x32xf32>
    %530 = vector.extract_strided_slice %528 {offsets = [0, 32], sizes = [8, 32], strides = [1, 1]} : vector<8x128xf32> to vector<8x32xf32>
    %531 = vector.extract_strided_slice %524 {offsets = [0, 64], sizes = [8, 32], strides = [1, 1]} : vector<8x128xf32> to vector<8x32xf32>
    %532 = vector.extract_strided_slice %528 {offsets = [0, 96], sizes = [8, 32], strides = [1, 1]} : vector<8x128xf32> to vector<8x32xf32>
    %533 = arith.mulf %530, %518 : vector<8x32xf32>
    %534 = arith.mulf %529, %531 : vector<8x32xf32>
    %535 = arith.addf %533, %534 : vector<8x32xf32>
    %536 = math.tanh %535 : vector<8x32xf32>
    %537 = arith.mulf %532, %536 : vector<8x32xf32>
    %538 = vector.extract_strided_slice %433 {offsets = [48, 0], sizes = [8, 128], strides = [1, 1]} : vector<64x128xf32> to vector<8x128xf32>
    %cst_123 = arith.constant dense<0.000000e+00> : vector<8x128xf32>
    %539 = tpu.matmul %537, %429, %cst_123 {dimension_numbers = #tpu.dot_dimension_numbers<[1], [0], [0], [1], [0, 0, 1, 1], [], []>} : vector<8x32xf32>, vector<32x128xf32>, vector<8x128xf32> -> vector<8x128xf32>
    %540 = arith.addf %538, %539 : vector<8x128xf32>
    %541 = math.tanh %540 : vector<8x128xf32>
    %cst_124 = arith.constant 5.000000e-01 : f32
    %542 = vector.broadcast %cst_124 : f32 to vector<8x128xf32>
    %543 = arith.mulf %542, %541 : vector<8x128xf32>
    %cst_125 = arith.constant 5.000000e-01 : f32
    %544 = vector.broadcast %cst_125 : f32 to vector<8x128xf32>
    %545 = arith.addf %543, %544 : vector<8x128xf32>
    %546 = vector.extract_strided_slice %545 {offsets = [0, 0], sizes = [8, 32], strides = [1, 1]} : vector<8x128xf32> to vector<8x32xf32>
    %547 = vector.extract_strided_slice %545 {offsets = [0, 32], sizes = [8, 32], strides = [1, 1]} : vector<8x128xf32> to vector<8x32xf32>
    %548 = vector.extract_strided_slice %541 {offsets = [0, 64], sizes = [8, 32], strides = [1, 1]} : vector<8x128xf32> to vector<8x32xf32>
    %549 = vector.extract_strided_slice %545 {offsets = [0, 96], sizes = [8, 32], strides = [1, 1]} : vector<8x128xf32> to vector<8x32xf32>
    %550 = arith.mulf %547, %535 : vector<8x32xf32>
    %551 = arith.mulf %546, %548 : vector<8x32xf32>
    %552 = arith.addf %550, %551 : vector<8x32xf32>
    %553 = math.tanh %552 : vector<8x32xf32>
    %554 = arith.mulf %549, %553 : vector<8x32xf32>
    %555 = vector.extract_strided_slice %433 {offsets = [56, 0], sizes = [8, 128], strides = [1, 1]} : vector<64x128xf32> to vector<8x128xf32>
    %cst_126 = arith.constant dense<0.000000e+00> : vector<8x128xf32>
    %556 = tpu.matmul %554, %429, %cst_126 {dimension_numbers = #tpu.dot_dimension_numbers<[1], [0], [0], [1], [0, 0, 1, 1], [], []>} : vector<8x32xf32>, vector<32x128xf32>, vector<8x128xf32> -> vector<8x128xf32>
    %557 = arith.addf %555, %556 : vector<8x128xf32>
    %558 = math.tanh %557 : vector<8x128xf32>
    %cst_127 = arith.constant 5.000000e-01 : f32
    %559 = vector.broadcast %cst_127 : f32 to vector<8x128xf32>
    %560 = arith.mulf %559, %558 : vector<8x128xf32>
    %cst_128 = arith.constant 5.000000e-01 : f32
    %561 = vector.broadcast %cst_128 : f32 to vector<8x128xf32>
    %562 = arith.addf %560, %561 : vector<8x128xf32>
    %563 = vector.extract_strided_slice %562 {offsets = [0, 0], sizes = [8, 32], strides = [1, 1]} : vector<8x128xf32> to vector<8x32xf32>
    %564 = vector.extract_strided_slice %562 {offsets = [0, 32], sizes = [8, 32], strides = [1, 1]} : vector<8x128xf32> to vector<8x32xf32>
    %565 = vector.extract_strided_slice %558 {offsets = [0, 64], sizes = [8, 32], strides = [1, 1]} : vector<8x128xf32> to vector<8x32xf32>
    %566 = vector.extract_strided_slice %562 {offsets = [0, 96], sizes = [8, 32], strides = [1, 1]} : vector<8x128xf32> to vector<8x32xf32>
    %567 = arith.mulf %564, %552 : vector<8x32xf32>
    %568 = arith.mulf %563, %565 : vector<8x32xf32>
    %569 = arith.addf %567, %568 : vector<8x32xf32>
    %570 = math.tanh %569 : vector<8x32xf32>
    %571 = arith.mulf %566, %570 : vector<8x32xf32>
    %572 = tpu.concatenate %452, %469, %486, %503, %520, %537, %554, %571 in 0 : vector<8x32xf32>, vector<8x32xf32>, vector<8x32xf32>, vector<8x32xf32>, vector<8x32xf32>, vector<8x32xf32>, vector<8x32xf32>, vector<8x32xf32> -> vector<64x32xf32>
    %c0_129 = arith.constant 0 : index
    %c0_130 = arith.constant 0 : index
    %573 = vector.load %arg6[%c0_129, %c0_130] : memref<33x16xf32, #tpu.memory_space<vmem>>, vector<32x16xf32>
    %c32_131 = arith.constant 32 : index
    %c0_132 = arith.constant 0 : index
    %574 = vector.load %arg6[%c32_131, %c0_132] : memref<33x16xf32, #tpu.memory_space<vmem>>, vector<1x16xf32>
    %cst_133 = arith.constant dense<0.000000e+00> : vector<64x16xf32>
    %575 = tpu.matmul %572, %573, %cst_133 {dimension_numbers = #tpu.dot_dimension_numbers<[1], [0], [0], [1], [0, 0, 1, 1], [], []>} : vector<64x32xf32>, vector<32x16xf32>, vector<64x16xf32> -> vector<64x16xf32>
    %576 = vector.broadcast %574 : vector<1x16xf32> to vector<64x16xf32>
    %577 = arith.addf %575, %576 : vector<64x16xf32>
    %c0_134 = arith.constant 0 : index
    %c0_135 = arith.constant 0 : index
    %c0_136 = arith.constant 0 : index
    %578 = vector.load %arg7[%c0_134, %c0_135, %c0_136] : memref<1x64x16xf32, #tpu.memory_space<vmem>>, vector<1x64x16xf32>
    %579 = vector.shape_cast %578 : vector<1x64x16xf32> to vector<64x16xf32>
    %580 = vector.shape_cast %577 : vector<64x16xf32> to vector<1x64x16xf32>
    tpu.vector_store %arg7[%c0_134, %c0_135, %c0_136], %580 {strides = array<i32>} : memref<1x64x16xf32, #tpu.memory_space<vmem>>, vector<1x64x16xf32>,
    return
  }
  func.func @transform_0(%arg0: i32) -> (i32, i32, i32) {
    %c0_i32 = arith.constant 0 : i32
    %c0_i32_0 = arith.constant 0 : i32
    %c0_i32_1 = arith.constant 0 : i32
    return %arg0, %c0_i32, %c0_i32_0 : i32, i32, i32
  }
  func.func @transform_1(%arg0: i32) -> (i32, i32) {
    %c0_i32 = arith.constant 0 : i32
    %c0_i32_0 = arith.constant 0 : i32
    %c0_i32_1 = arith.constant 0 : i32
    return %c0_i32, %c0_i32_0 : i32, i32
  }
  func.func @transform_2(%arg0: i32) -> (i32, i32) {
    %c0_i32 = arith.constant 0 : i32
    %c0_i32_0 = arith.constant 0 : i32
    %c0_i32_1 = arith.constant 0 : i32
    return %c0_i32, %c0_i32_0 : i32, i32
  }
  func.func @transform_3(%arg0: i32) -> (i32, i32) {
    %c0_i32 = arith.constant 0 : i32
    %c0_i32_0 = arith.constant 0 : i32
    %c0_i32_1 = arith.constant 0 : i32
    return %c0_i32, %c0_i32_0 : i32, i32
  }
  func.func @transform_4(%arg0: i32) -> (i32, i32) {
    %c0_i32 = arith.constant 0 : i32
    %c0_i32_0 = arith.constant 0 : i32
    %c0_i32_1 = arith.constant 0 : i32
    return %c0_i32, %c0_i32_0 : i32, i32
  }
  func.func @transform_5(%arg0: i32) -> (i32, i32) {
    %c0_i32 = arith.constant 0 : i32
    %c0_i32_0 = arith.constant 0 : i32
    %c0_i32_1 = arith.constant 0 : i32
    return %c0_i32, %c0_i32_0 : i32, i32
  }
  func.func @transform_6(%arg0: i32) -> (i32, i32, i32) {
    %c0_i32 = arith.constant 0 : i32
    %c0_i32_0 = arith.constant 0 : i32
    %c0_i32_1 = arith.constant 0 : i32
    return %arg0, %c0_i32, %c0_i32_0 : i32, i32, i32
  }
}

</mosaic_0001>

<llo_original>
// kernel: tpu_custom_call.1
$region0: #{tpu_custom_call.1}
  #allocation0 [shape = 'u32[]', space=smem, size = 0x4, offset = 0x4, fixed_abs, tag = 'smem constant byte address 0x4 - core index']
  #allocation1 [shape = 'u32[72,128]{1,0:T(1,128)}', space=vmem, size = 0x9000, scoped, tag = 'internal scratch']
  %s0 = inlined_call_operand.vmem [shape: f32[1,64,16], index: 0, kind: input, shape index: {}]
  %s1 = inlined_call_operand.hbm [shape: f32[49,128], index: 1, kind: input, shape index: {}]
  %s2 = inlined_call_operand.vmem [shape: f32[65,128], index: 2, kind: input, shape index: {}]
  %s3 = inlined_call_operand.hbm [shape: f32[65,128], index: 3, kind: input, shape index: {}]
  %s4 = inlined_call_operand.hbm [shape: f32[65,128], index: 4, kind: input, shape index: {}]
  %s5 = inlined_call_operand.vmem [shape: f32[33,16], index: 5, kind: input, shape index: {}]
  %s6 = inlined_call_operand.vmem [shape: f32[1,64,16], index: 6, kind: output, shape index: {}]
  %s7 = sld [smem:[#allocation0]]
  $region46: #{tpu_custom_call.1} parent=0
    _
  %s9 = ssub.s32 1, %s7
  %s10 = scalar_select 0, %s9, %s7
  $region1: #{tpu_custom_call.1} parent=0
    #allocation2 [shape = 'u8[28672]{0}', space=vmem, size = 0x7000, scoped, tag = 'input window, operand 1, single buffered']
    #allocation3 [shape = 's32[1]{0}', space=sflag, size = 0x4, scoped, tag = 'scoped memory for tpu_custom_call.1']
    #allocation4 [shape = 'u8[36864]{0}', space=vmem, size = 0x9000, scoped, tag = 'input window, operand 3, single buffered']
    #allocation5 [shape = 's32[1]{0}', space=sflag, size = 0x4, scoped, tag = 'scoped memory for tpu_custom_call.1']
    #allocation6 [shape = 'u8[36864]{0}', space=vmem, size = 0x9000, scoped, tag = 'input window, operand 4, single buffered']
    %11 = vsyncpa [#allocation3], 0
    %12 = vsyncpa [#allocation5], 0
    // Predicated region
    $region2: #{tpu_custom_call.1} parent=1 // pred_check
      _
    $region3: #{tpu_custom_call.1} parent=1 // pred_check_branch
      %14 = sbr.rel (0) target = $region5
    $region4: #{tpu_custom_call.1} parent=1 // pred_region
      _
    $region5: #{tpu_custom_call.1} parent=1 // pred_fallthru
      _
    // Predicated region
    $region6: #{tpu_custom_call.1} parent=1 // pred_check
      _
    $region7: #{tpu_custom_call.1} parent=1 // pred_check_branch
      %16 = sbr.rel (0) target = $region9
    $region8: #{tpu_custom_call.1} parent=1 // pred_region
      %18 = vsyncadd [#allocation3], 0
      %s19 = sshll.u32 %s1, 4
      %s20 = int_to_ptr.hbm [resolvable:$true] %s19
      %s21 = sshll.u32 [#allocation2], 4
      %s22 = int_to_ptr.vmem [resolvable:$true] %s21
      %27 = dma.hbm_to_vmem [thread:$0]  %s20, 896, %s22, [#allocation3], 128, 128, 8
    $region9: #{tpu_custom_call.1} parent=1 // pred_fallthru
      _
    // Predicated region
    $region10: #{tpu_custom_call.1} parent=1 // pred_check
      _
    $region11: #{tpu_custom_call.1} parent=1 // pred_check_branch
      %29 = sbr.rel (0) target = $region13
    $region12: #{tpu_custom_call.1} parent=1 // pred_region
      _
    $region13: #{tpu_custom_call.1} parent=1 // pred_fallthru
      _
    // Predicated region
    $region14: #{tpu_custom_call.1} parent=1 // pred_check
      _
    $region15: #{tpu_custom_call.1} parent=1 // pred_check_branch
      %31 = sbr.rel (0) target = $region17
    $region16: #{tpu_custom_call.1} parent=1 // pred_region
      %33 = vsyncadd [#allocation5], 0
      %s34 = sshll.u32 %s3, 4
      %s35 = int_to_ptr.hbm [resolvable:$true] %s34
      %s36 = sshll.u32 [#allocation4], 4
      %s37 = int_to_ptr.vmem [resolvable:$true] %s36
      %42 = dma.hbm_to_vmem [thread:$0]  %s35, 1152, %s37, [#allocation5], 128, 128, 8
    $region17: #{tpu_custom_call.1} parent=1 // pred_fallthru
      _
    // Predicated region
    $region18: #{tpu_custom_call.1} parent=1 // pred_check
      _
    $region19: #{tpu_custom_call.1} parent=1 // pred_check_branch
      %44 = sbr.rel (0) target = $region21
    $region20: #{tpu_custom_call.1} parent=1 // pred_region
      %46 = vsyncadd [#allocation5], 0
      %s47 = sshll.u32 %s4, 4
      %s48 = int_to_ptr.hbm [resolvable:$true] %s47
      %s49 = sshll.u32 [#allocation6], 4
      %s50 = int_to_ptr.vmem [resolvable:$true] %s49
      %55 = dma.hbm_to_vmem [thread:$0]  %s48, 1152, %s50, [#allocation5], 128, 128, 8
    $region21: #{tpu_custom_call.1} parent=1 // pred_fallthru
      _
    // Predicated region
    $region22: #{tpu_custom_call.1} parent=1 // pred_check
      _
    $region23: #{tpu_custom_call.1} parent=1 // pred_check_branch
      %57 = sbr.rel (0) target = $region25
    $region24: #{tpu_custom_call.1} parent=1 // pred_region
      _
    $region25: #{tpu_custom_call.1} parent=1 // pred_fallthru
      _
    // Predicated region
    $region26: #{tpu_custom_call.1} parent=1 // pred_check
      _
    $region27: #{tpu_custom_call.1} parent=1 // pred_check_branch
      %59 = sbr.rel (0) target = $region29
    $region28: #{tpu_custom_call.1} parent=1 // pred_region
      %61 = dma.done [#allocation3], 896
    $region29: #{tpu_custom_call.1} parent=1 // pred_fallthru
      _
    // Predicated region
    $region30: #{tpu_custom_call.1} parent=1 // pred_check
      _
    $region31: #{tpu_custom_call.1} parent=1 // pred_check_branch
      %63 = sbr.rel (0) target = $region33
    $region32: #{tpu_custom_call.1} parent=1 // pred_region
      %65 = dma.done [#allocation5], 1152
    $region33: #{tpu_custom_call.1} parent=1 // pred_fallthru
      _
    // Predicated region
    $region34: #{tpu_custom_call.1} parent=1 // pred_check
      _
    $region35: #{tpu_custom_call.1} parent=1 // pred_check_branch
      %67 = sbr.rel (0) target = $region37
    $region36: #{tpu_custom_call.1} parent=1 // pred_region
      %69 = dma.done [#allocation5], 1152
    $region37: #{tpu_custom_call.1} parent=1 // pred_fallthru
      _
    %v70 = vld [vmem:[%s0] sm:$0xff]
    %v71 = vld [vmem:[%s0 + $0x8] sm:$0xff]
    %v72 = vld [vmem:[%s0 + $0x10] sm:$0xff]
    %v73 = vld [vmem:[%s0 + $0x18] sm:$0xff]
    %v74 = vld [vmem:[%s0 + $0x20] sm:$0xff]
    %v75 = vld [vmem:[%s0 + $0x28] sm:$0xff]
    %v76 = vld [vmem:[%s0 + $0x30] sm:$0xff]
    %v77 = vld [vmem:[%s0 + $0x38] sm:$0xff]
    %v78 = vld [vmem:[#allocation2] sm:$0xff]
    %v79 = vld [vmem:[#allocation2 + $0x8] sm:$0xff]
    %v80 = vld [vmem:[#allocation2 + $0x10] sm:$0xff]
    %v81 = vld [vmem:[#allocation2 + $0x18] sm:$0xff]
    %v82 = vld [vmem:[#allocation2 + $0x20] sm:$0xff]
    %v83 = vld [vmem:[#allocation2 + $0x28] sm:$0xff]
    %v84 = vld [vmem:[#allocation2 + $0x30] sm:$0x1]
    %v85 = vperm.slane %v84, 0
    %vm86 = vcmask 130048
    %v88 = vsel %vm86, %v70, 0
    %v91 = vsel %vm86, %v71, 0
    %v94 = vsel %vm86, %v72, 0
    %v97 = vsel %vm86, %v73, 0
    %v100 = vsel %vm86, %v74, 0
    %v103 = vsel %vm86, %v75, 0
    %v106 = vsel %vm86, %v76, 0
    %v109 = vsel %vm86, %v77, 0
    %111 = vmatpush.msra.mxu0 0.0
    %112 = vmatpush.msra.mxu0 0.0
    %113 = vmatpush.msra.mxu0 0.0
    %114 = vmatpush.msra.mxu0 0.0
    %115 = vmatpush.msra.mxu0 0.0
    %116 = vmatpush.msra.mxu0 0.0
    %117 = vmatpush.msra.mxu0 0.0
    %118 = vmatpush.msra.mxu0 0.0
    %119 = vmatpush.msra.mxu0 0.0
    %120 = vmatpush.msra.mxu0 0.0
    %121 = vmatpush.msra.mxu0 0.0
    %122 = vmatpush.msra.mxu0 0.0
    %123 = vmatpush.msra.mxu0 0.0
    %124 = vmatpush.msra.mxu0 0.0
    %125 = vmatpush.msra.mxu0 %v79
    %126 = vmatpush.msra.mxu0 %v78
    %127 = vmatmul.f32.gmra.mxu0 %v88
    %v128 = vpop.f32.mrf.mxu0
    %v129 = vadd.f32 %v85, %v128
    %130 = vmatmul.f32.gmra.mxu0 %v91
    %v131 = vpop.f32.mrf.mxu0
    %v132 = vadd.f32 %v85, %v131
    %133 = vmatmul.f32.gmra.mxu0 %v94
    %v134 = vpop.f32.mrf.mxu0
    %v135 = vadd.f32 %v85, %v134
    %136 = vmatmul.f32.gmra.mxu0 %v97
    %v137 = vpop.f32.mrf.mxu0
    %v138 = vadd.f32 %v85, %v137
    %139 = vmatmul.f32.gmra.mxu0 %v100
    %v140 = vpop.f32.mrf.mxu0
    %v141 = vadd.f32 %v85, %v140
    %142 = vmatmul.f32.gmra.mxu0 %v103
    %v143 = vpop.f32.mrf.mxu0
    %v144 = vadd.f32 %v85, %v143
    %145 = vmatmul.f32.gmra.mxu0 %v106
    %v146 = vpop.f32.mrf.mxu0
    %v147 = vadd.f32 %v85, %v146
    %148 = vmatmul.f32.gmra.mxu0 %v109
    %v149 = vpop.f32.mrf.mxu0
    %v150 = vadd.f32 %v85, %v149
    %151 = vdwg.mxu0
    %vm152 = vcmask 261120
    %v154 = vsel %vm152, 0.0, 0
    %156 = vmatpush.msra.mxu0 0.0
    %157 = vmatpush.msra.mxu0 0.0
    %158 = vmatpush.msra.mxu0 0.0
    %159 = vmatpush.msra.mxu0 0.0
    %160 = vmatpush.msra.mxu0 0.0
    %161 = vmatpush.msra.mxu0 0.0
    %162 = vmatpush.msra.mxu0 0.0
    %163 = vmatpush.msra.mxu0 0.0
    %164 = vmatpush.msra.mxu0 0.0
    %165 = vmatpush.msra.mxu0 0.0
    %166 = vmatpush.msra.mxu0 0.0
    %167 = vmatpush.msra.mxu0 0.0
    %168 = vmatpush.msra.mxu0 %v83
    %169 = vmatpush.msra.mxu0 %v82
    %170 = vmatpush.msra.mxu0 %v81
    %171 = vmatpush.msra.mxu0 %v80
    %172 = vmatmul.f32.gmra.mxu0 %v154
    %v173 = vpop.f32.mrf.mxu0
    %v174 = vadd.f32 0.0, %v173
    %175 = vdwg.mxu0
    %v176 = vadd.f32 %v129, %v174
    %v177 = vtanh.pop %v176
    %v178 = vmul.f32 %v177, 0.5
    %v179 = vadd.f32 %v178, 0.5
    %v180 = vmul.f32 %v179, 0.0
    %182 = vrot.lane.b32.xlu0 %v177, 64
    %v183 = vpop.permute.xlu0 %182
    %v185 = vmul.f32 %v179, %v183
    %187 = vrot.lane.b32.xlu0 %v185, 32
    %v188 = vpop.permute.xlu0 %187
    %v190 = vadd.f32 %v180, %v188
    %v191 = vtanh.pop %v190
    %193 = vrot.lane.b32.xlu0 %v191, 64
    %v194 = vpop.permute.xlu0 %193
    %v196 = vmul.f32 %v179, %v194
    %198 = vrot.lane.b32.xlu0 %v196, 32
    %v199 = vpop.permute.xlu0 %198
    %v200 = vsel %vm152, %v199, 0
    %202 = vmatpush.msra.mxu0 0.0
    %203 = vmatpush.msra.mxu0 0.0
    %204 = vmatpush.msra.mxu0 0.0
    %205 = vmatpush.msra.mxu0 0.0
    %206 = vmatpush.msra.mxu0 0.0
    %207 = vmatpush.msra.mxu0 0.0
    %208 = vmatpush.msra.mxu0 0.0
    %209 = vmatpush.msra.mxu0 0.0
    %210 = vmatpush.msra.mxu0 0.0
    %211 = vmatpush.msra.mxu0 0.0
    %212 = vmatpush.msra.mxu0 0.0
    %213 = vmatpush.msra.mxu0 0.0
    %214 = vmatpush.msra.mxu0 %v83
    %215 = vmatpush.msra.mxu0 %v82
    %216 = vmatpush.msra.mxu0 %v81
    %217 = vmatpush.msra.mxu0 %v80
    %218 = vmatmul.f32.gmra.mxu0 %v200
    %v219 = vpop.f32.mrf.mxu0
    %v220 = vadd.f32 0.0, %v219
    %221 = vdwg.mxu0
    %v222 = vadd.f32 %v132, %v220
    %v223 = vtanh.pop %v222
    %v224 = vmul.f32 %v223, 0.5
    %v225 = vadd.f32 %v224, 0.5
    %v226 = vmul.f32 %v225, %v190
    %228 = vrot.lane.b32.xlu0 %v223, 64
    %v229 = vpop.permute.xlu0 %228
    %v231 = vmul.f32 %v225, %v229
    %233 = vrot.lane.b32.xlu0 %v231, 32
    %v234 = vpop.permute.xlu0 %233
    %v236 = vadd.f32 %v226, %v234
    %v237 = vtanh.pop %v236
    %239 = vrot.lane.b32.xlu0 %v237, 64
    %v240 = vpop.permute.xlu0 %239
    %v242 = vmul.f32 %v225, %v240
    %244 = vrot.lane.b32.xlu0 %v242, 32
    %v245 = vpop.permute.xlu0 %244
    %v246 = vsel %vm152, %v245, 0
    %248 = vmatpush.msra.mxu0 0.0
    %249 = vmatpush.msra.mxu0 0.0
    %250 = vmatpush.msra.mxu0 0.0
    %251 = vmatpush.msra.mxu0 0.0
    %252 = vmatpush.msra.mxu0 0.0
    %253 = vmatpush.msra.mxu0 0.0
    %254 = vmatpush.msra.mxu0 0.0
    %255 = vmatpush.msra.mxu0 0.0
    %256 = vmatpush.msra.mxu0 0.0
    %257 = vmatpush.msra.mxu0 0.0
    %258 = vmatpush.msra.mxu0 0.0
    %259 = vmatpush.msra.mxu0 0.0
    %260 = vmatpush.msra.mxu0 %v83
    %261 = vmatpush.msra.mxu0 %v82
    %262 = vmatpush.msra.mxu0 %v81
    %263 = vmatpush.msra.mxu0 %v80
    %264 = vmatmul.f32.gmra.mxu0 %v246
    %v265 = vpop.f32.mrf.mxu0
    %v266 = vadd.f32 0.0, %v265
    %267 = vdwg.mxu0
    %v268 = vadd.f32 %v135, %v266
    %v269 = vtanh.pop %v268
    %v270 = vmul.f32 %v269, 0.5
    %v271 = vadd.f32 %v270, 0.5
    %v272 = vmul.f32 %v271, %v236
    %274 = vrot.lane.b32.xlu0 %v269, 64
    %v275 = vpop.permute.xlu0 %274
    %v277 = vmul.f32 %v271, %v275
    %279 = vrot.lane.b32.xlu0 %v277, 32
    %v280 = vpop.permute.xlu0 %279
    %v282 = vadd.f32 %v272, %v280
    %v283 = vtanh.pop %v282
    %285 = vrot.lane.b32.xlu0 %v283, 64
    %v286 = vpop.permute.xlu0 %285
    %v288 = vmul.f32 %v271, %v286
    %290 = vrot.lane.b32.xlu0 %v288, 32
    %v291 = vpop.permute.xlu0 %290
    %v292 = vsel %vm152, %v291, 0
    %294 = vmatpush.msra.mxu0 0.0
    %295 = vmatpush.msra.mxu0 0.0
    %296 = vmatpush.msra.mxu0 0.0
    %297 = vmatpush.msra.mxu0 0.0
    %298 = vmatpush.msra.mxu0 0.0
    %299 = vmatpush.msra.mxu0 0.0
    %300 = vmatpush.msra.mxu0 0.0
    %301 = vmatpush.msra.mxu0 0.0
    %302 = vmatpush.msra.mxu0 0.0
    %303 = vmatpush.msra.mxu0 0.0
    %304 = vmatpush.msra.mxu0 0.0
    %305 = vmatpush.msra.mxu0 0.0
    %306 = vmatpush.msra.mxu0 %v83
    %307 = vmatpush.msra.mxu0 %v82
    %308 = vmatpush.msra.mxu0 %v81
    %309 = vmatpush.msra.mxu0 %v80
    %310 = vmatmul.f32.gmra.mxu0 %v292
    %v311 = vpop.f32.mrf.mxu0
    %v312 = vadd.f32 0.0, %v311
    %313 = vdwg.mxu0
    %v314 = vadd.f32 %v138, %v312
    %v315 = vtanh.pop %v314
    %v316 = vmul.f32 %v315, 0.5
    %v317 = vadd.f32 %v316, 0.5
    %v318 = vmul.f32 %v317, %v282
    %320 = vrot.lane.b32.xlu0 %v315, 64
    %v321 = vpop.permute.xlu0 %320
    %v323 = vmul.f32 %v317, %v321
    %325 = vrot.lane.b32.xlu0 %v323, 32
    %v326 = vpop.permute.xlu0 %325
    %v328 = vadd.f32 %v318, %v326
    %v329 = vtanh.pop %v328
    %331 = vrot.lane.b32.xlu0 %v329, 64
    %v332 = vpop.permute.xlu0 %331
    %v334 = vmul.f32 %v317, %v332
    %336 = vrot.lane.b32.xlu0 %v334, 32
    %v337 = vpop.permute.xlu0 %336
    %v338 = vsel %vm152, %v337, 0
    %340 = vmatpush.msra.mxu0 0.0
    %341 = vmatpush.msra.mxu0 0.0
    %342 = vmatpush.msra.mxu0 0.0
    %343 = vmatpush.msra.mxu0 0.0
    %344 = vmatpush.msra.mxu0 0.0
    %345 = vmatpush.msra.mxu0 0.0
    %346 = vmatpush.msra.mxu0 0.0
    %347 = vmatpush.msra.mxu0 0.0
    %348 = vmatpush.msra.mxu0 0.0
    %349 = vmatpush.msra.mxu0 0.0
    %350 = vmatpush.msra.mxu0 0.0
    %351 = vmatpush.msra.mxu0 0.0
    %352 = vmatpush.msra.mxu0 %v83
    %353 = vmatpush.msra.mxu0 %v82
    %354 = vmatpush.msra.mxu0 %v81
    %355 = vmatpush.msra.mxu0 %v80
    %356 = vmatmul.f32.gmra.mxu0 %v338
    %v357 = vpop.f32.mrf.mxu0
    %v358 = vadd.f32 0.0, %v357
    %359 = vdwg.mxu0
    %v360 = vadd.f32 %v141, %v358
    %v361 = vtanh.pop %v360
    %v362 = vmul.f32 %v361, 0.5
    %v363 = vadd.f32 %v362, 0.5
    %v364 = vmul.f32 %v363, %v328
    %366 = vrot.lane.b32.xlu0 %v361, 64
    %v367 = vpop.permute.xlu0 %366
    %v369 = vmul.f32 %v363, %v367
    %371 = vrot.lane.b32.xlu0 %v369, 32
    %v372 = vpop.permute.xlu0 %371
    %v374 = vadd.f32 %v364, %v372
    %v375 = vtanh.pop %v374
    %377 = vrot.lane.b32.xlu0 %v375, 64
    %v378 = vpop.permute.xlu0 %377
    %v380 = vmul.f32 %v363, %v378
    %382 = vrot.lane.b32.xlu0 %v380, 32
    %v383 = vpop.permute.xlu0 %382
    %v384 = vsel %vm152, %v383, 0
    %386 = vmatpush.msra.mxu0 0.0
    %387 = vmatpush.msra.mxu0 0.0
    %388 = vmatpush.msra.mxu0 0.0
    %389 = vmatpush.msra.mxu0 0.0
    %390 = vmatpush.msra.mxu0 0.0
    %391 = vmatpush.msra.mxu0 0.0
    %392 = vmatpush.msra.mxu0 0.0
    %393 = vmatpush.msra.mxu0 0.0
    %394 = vmatpush.msra.mxu0 0.0
    %395 = vmatpush.msra.mxu0 0.0
    %396 = vmatpush.msra.mxu0 0.0
    %397 = vmatpush.msra.mxu0 0.0
    %398 = vmatpush.msra.mxu0 %v83
    %399 = vmatpush.msra.mxu0 %v82
    %400 = vmatpush.msra.mxu0 %v81
    %401 = vmatpush.msra.mxu0 %v80
    %402 = vmatmul.f32.gmra.mxu0 %v384
    %v403 = vpop.f32.mrf.mxu0
    %v404 = vadd.f32 0.0, %v403
    %405 = vdwg.mxu0
    %v406 = vadd.f32 %v144, %v404
    %v407 = vtanh.pop %v406
    %v408 = vmul.f32 %v407, 0.5
    %v409 = vadd.f32 %v408, 0.5
    %v410 = vmul.f32 %v409, %v374
    %412 = vrot.lane.b32.xlu0 %v407, 64
    %v413 = vpop.permute.xlu0 %412
    %v415 = vmul.f32 %v409, %v413
    %417 = vrot.lane.b32.xlu0 %v415, 32
    %v418 = vpop.permute.xlu0 %417
    %v420 = vadd.f32 %v410, %v418
    %v421 = vtanh.pop %v420
    %423 = vrot.lane.b32.xlu0 %v421, 64
    %v424 = vpop.permute.xlu0 %423
    %v426 = vmul.f32 %v409, %v424
    %428 = vrot.lane.b32.xlu0 %v426, 32
    %v429 = vpop.permute.xlu0 %428
    %v430 = vsel %vm152, %v429, 0
    %432 = vmatpush.msra.mxu0 0.0
    %433 = vmatpush.msra.mxu0 0.0
    %434 = vmatpush.msra.mxu0 0.0
    %435 = vmatpush.msra.mxu0 0.0
    %436 = vmatpush.msra.mxu0 0.0
    %437 = vmatpush.msra.mxu0 0.0
    %438 = vmatpush.msra.mxu0 0.0
    %439 = vmatpush.msra.mxu0 0.0
    %440 = vmatpush.msra.mxu0 0.0
    %441 = vmatpush.msra.mxu0 0.0
    %442 = vmatpush.msra.mxu0 0.0
    %443 = vmatpush.msra.mxu0 0.0
    %444 = vmatpush.msra.mxu0 %v83
    %445 = vmatpush.msra.mxu0 %v82
    %446 = vmatpush.msra.mxu0 %v81
    %447 = vmatpush.msra.mxu0 %v80
    %448 = vmatmul.f32.gmra.mxu0 %v430
    %v449 = vpop.f32.mrf.mxu0
    %v450 = vadd.f32 0.0, %v449
    %451 = vdwg.mxu0
    %v452 = vadd.f32 %v147, %v450
    %v453 = vtanh.pop %v452
    %v454 = vmul.f32 %v453, 0.5
    %v455 = vadd.f32 %v454, 0.5
    %v456 = vmul.f32 %v455, %v420
    %458 = vrot.lane.b32.xlu0 %v453, 64
    %v459 = vpop.permute.xlu0 %458
    %v461 = vmul.f32 %v455, %v459
    %463 = vrot.lane.b32.xlu0 %v461, 32
    %v464 = vpop.permute.xlu0 %463
    %v466 = vadd.f32 %v456, %v464
    %v467 = vtanh.pop %v466
    %469 = vrot.lane.b32.xlu0 %v467, 64
    %v470 = vpop.permute.xlu0 %469
    %v472 = vmul.f32 %v455, %v470
    %474 = vrot.lane.b32.xlu0 %v472, 32
    %v475 = vpop.permute.xlu0 %474
    %v476 = vsel %vm152, %v475, 0
    %478 = vmatpush.msra.mxu0 0.0
    %479 = vmatpush.msra.mxu0 0.0
    %480 = vmatpush.msra.mxu0 0.0
    %481 = vmatpush.msra.mxu0 0.0
    %482 = vmatpush.msra.mxu0 0.0
    %483 = vmatpush.msra.mxu0 0.0
    %484 = vmatpush.msra.mxu0 0.0
    %485 = vmatpush.msra.mxu0 0.0
    %486 = vmatpush.msra.mxu0 0.0
    %487 = vmatpush.msra.mxu0 0.0
    %488 = vmatpush.msra.mxu0 0.0
    %489 = vmatpush.msra.mxu0 0.0
    %490 = vmatpush.msra.mxu0 %v83
    %491 = vmatpush.msra.mxu0 %v82
    %492 = vmatpush.msra.mxu0 %v81
    %493 = vmatpush.msra.mxu0 %v80
    %494 = vmatmul.f32.gmra.mxu0 %v476
    %v495 = vpop.f32.mrf.mxu0
    %v496 = vadd.f32 0.0, %v495
    %497 = vdwg.mxu0
    %v498 = vadd.f32 %v150, %v496
    %v499 = vtanh.pop %v498
    %v500 = vmul.f32 %v499, 0.5
    %v501 = vadd.f32 %v500, 0.5
    %v502 = vmul.f32 %v501, %v466
    %504 = vrot.lane.b32.xlu0 %v499, 64
    %v505 = vpop.permute.xlu0 %504
    %v507 = vmul.f32 %v501, %v505
    %509 = vrot.lane.b32.xlu0 %v507, 32
    %v510 = vpop.permute.xlu0 %509
    %v512 = vadd.f32 %v502, %v510
    %v513 = vtanh.pop %v512
    %515 = vrot.lane.b32.xlu0 %v513, 64
    %v516 = vpop.permute.xlu0 %515
    %v518 = vmul.f32 %v501, %v516
    %v519 = vld [vmem:[%s2] sm:$0xff]
    %v520 = vld [vmem:[%s2 + $0x8] sm:$0xff]
    %v521 = vld [vmem:[%s2 + $0x10] sm:$0xff]
    %v522 = vld [vmem:[%s2 + $0x18] sm:$0xff]
    %v523 = vld [vmem:[%s2 + $0x20] sm:$0xff]
    %v524 = vld [vmem:[%s2 + $0x28] sm:$0xff]
    %v525 = vld [vmem:[%s2 + $0x30] sm:$0xff]
    %v526 = vld [vmem:[%s2 + $0x38] sm:$0xff]
    %v527 = vld [vmem:[%s2 + $0x40] sm:$0x1]
    %v528 = vperm.slane %v527, 0
    %530 = vrot.lane.b32.xlu0 %v518, 32
    %v531 = vpop.permute.xlu0 %530
    %v532 = vsel %vm152, %v531, 0
    %534 = vmatpush.msra.mxu0 0.0
    %535 = vmatpush.msra.mxu0 0.0
    %536 = vmatpush.msra.mxu0 0.0
    %537 = vmatpush.msra.mxu0 0.0
    %538 = vmatpush.msra.mxu0 0.0
    %539 = vmatpush.msra.mxu0 0.0
    %540 = vmatpush.msra.mxu0 0.0
    %541 = vmatpush.msra.mxu0 0.0
    %542 = vmatpush.msra.mxu0 0.0
    %543 = vmatpush.msra.mxu0 0.0
    %544 = vmatpush.msra.mxu0 0.0
    %545 = vmatpush.msra.mxu0 0.0
    %546 = vmatpush.msra.mxu0 %v522
    %547 = vmatpush.msra.mxu0 %v521
    %548 = vmatpush.msra.mxu0 %v520
    %549 = vmatpush.msra.mxu0 %v519
    %550 = vmatmul.f32.gmra.mxu0 %v200
    %v551 = vpop.f32.mrf.mxu0
    %v552 = vadd.f32 %v528, %v551
    %553 = vmatmul.f32.gmra.mxu0 %v246
    %v554 = vpop.f32.mrf.mxu0
    %v555 = vadd.f32 %v528, %v554
    %556 = vmatmul.f32.gmra.mxu0 %v292
    %v557 = vpop.f32.mrf.mxu0
    %v558 = vadd.f32 %v528, %v557
    %559 = vmatmul.f32.gmra.mxu0 %v338
    %v560 = vpop.f32.mrf.mxu0
    %v561 = vadd.f32 %v528, %v560
    %562 = vmatmul.f32.gmra.mxu0 %v384
    %v563 = vpop.f32.mrf.mxu0
    %v564 = vadd.f32 %v528, %v563
    %565 = vmatmul.f32.gmra.mxu0 %v430
    %v566 = vpop.f32.mrf.mxu0
    %v567 = vadd.f32 %v528, %v566
    %568 = vmatmul.f32.gmra.mxu0 %v476
    %v569 = vpop.f32.mrf.mxu0
    %v570 = vadd.f32 %v528, %v569
    %571 = vmatmul.f32.gmra.mxu0 %v532
    %v572 = vpop.f32.mrf.mxu0
    %v573 = vadd.f32 %v528, %v572
    %574 = vdwg.mxu0
    %575 = vmatpush.msra.mxu0 0.0
    %576 = vmatpush.msra.mxu0 0.0
    %577 = vmatpush.msra.mxu0 0.0
    %578 = vmatpush.msra.mxu0 0.0
    %579 = vmatpush.msra.mxu0 0.0
    %580 = vmatpush.msra.mxu0 0.0
    %581 = vmatpush.msra.mxu0 0.0
    %582 = vmatpush.msra.mxu0 0.0
    %583 = vmatpush.msra.mxu0 0.0
    %584 = vmatpush.msra.mxu0 0.0
    %585 = vmatpush.msra.mxu0 0.0
    %586 = vmatpush.msra.mxu0 0.0
    %587 = vmatpush.msra.mxu0 %v526
    %588 = vmatpush.msra.mxu0 %v525
    %589 = vmatpush.msra.mxu0 %v524
    %590 = vmatpush.msra.mxu0 %v523
    %591 = vmatmul.f32.gmra.mxu0 %v154
    %v592 = vpop.f32.mrf.mxu0
    %v593 = vadd.f32 0.0, %v592
    %594 = vdwg.mxu0
    %v595 = vadd.f32 %v552, %v593
    %v596 = vtanh.pop %v595
    %v597 = vmul.f32 %v596, 0.5
    %v598 = vadd.f32 %v597, 0.5
    %v599 = vmul.f32 %v598, 0.0
    %601 = vrot.lane.b32.xlu0 %v596, 64
    %v602 = vpop.permute.xlu0 %601
    %v604 = vmul.f32 %v598, %v602
    %606 = vrot.lane.b32.xlu0 %v604, 32
    %v607 = vpop.permute.xlu0 %606
    %v609 = vadd.f32 %v599, %v607
    %v610 = vtanh.pop %v609
    %612 = vrot.lane.b32.xlu0 %v610, 64
    %v613 = vpop.permute.xlu0 %612
    %v615 = vmul.f32 %v598, %v613
    %617 = vrot.lane.b32.xlu0 %v615, 32
    %v618 = vpop.permute.xlu0 %617
    %v619 = vsel %vm152, %v618, 0
    %621 = vmatpush.msra.mxu0 0.0
    %622 = vmatpush.msra.mxu0 0.0
    %623 = vmatpush.msra.mxu0 0.0
    %624 = vmatpush.msra.mxu0 0.0
    %625 = vmatpush.msra.mxu0 0.0
    %626 = vmatpush.msra.mxu0 0.0
    %627 = vmatpush.msra.mxu0 0.0
    %628 = vmatpush.msra.mxu0 0.0
    %629 = vmatpush.msra.mxu0 0.0
    %630 = vmatpush.msra.mxu0 0.0
    %631 = vmatpush.msra.mxu0 0.0
    %632 = vmatpush.msra.mxu0 0.0
    %633 = vmatpush.msra.mxu0 %v526
    %634 = vmatpush.msra.mxu0 %v525
    %635 = vmatpush.msra.mxu0 %v524
    %636 = vmatpush.msra.mxu0 %v523
    %637 = vmatmul.f32.gmra.mxu0 %v619
    %v638 = vpop.f32.mrf.mxu0
    %v639 = vadd.f32 0.0, %v638
    %640 = vdwg.mxu0
    %v641 = vadd.f32 %v555, %v639
    %v642 = vtanh.pop %v641
    %v643 = vmul.f32 %v642, 0.5
    %v644 = vadd.f32 %v643, 0.5
    %v645 = vmul.f32 %v644, %v609
    %647 = vrot.lane.b32.xlu0 %v642, 64
    %v648 = vpop.permute.xlu0 %647
    %v650 = vmul.f32 %v644, %v648
    %652 = vrot.lane.b32.xlu0 %v650, 32
    %v653 = vpop.permute.xlu0 %652
    %v655 = vadd.f32 %v645, %v653
    %v656 = vtanh.pop %v655
    %658 = vrot.lane.b32.xlu0 %v656, 64
    %v659 = vpop.permute.xlu0 %658
    %v661 = vmul.f32 %v644, %v659
    %663 = vrot.lane.b32.xlu0 %v661, 32
    %v664 = vpop.permute.xlu0 %663
    %v665 = vsel %vm152, %v664, 0
    %667 = vmatpush.msra.mxu0 0.0
    %668 = vmatpush.msra.mxu0 0.0
    %669 = vmatpush.msra.mxu0 0.0
    %670 = vmatpush.msra.mxu0 0.0
    %671 = vmatpush.msra.mxu0 0.0
    %672 = vmatpush.msra.mxu0 0.0
    %673 = vmatpush.msra.mxu0 0.0
    %674 = vmatpush.msra.mxu0 0.0
    %675 = vmatpush.msra.mxu0 0.0
    %676 = vmatpush.msra.mxu0 0.0
    %677 = vmatpush.msra.mxu0 0.0
    %678 = vmatpush.msra.mxu0 0.0
    %679 = vmatpush.msra.mxu0 %v526
    %680 = vmatpush.msra.mxu0 %v525
    %681 = vmatpush.msra.mxu0 %v524
    %682 = vmatpush.msra.mxu0 %v523
    %683 = vmatmul.f32.gmra.mxu0 %v665
    %v684 = vpop.f32.mrf.mxu0
    %v685 = vadd.f32 0.0, %v684
    %686 = vdwg.mxu0
    %v687 = vadd.f32 %v558, %v685
    %v688 = vtanh.pop %v687
    %v689 = vmul.f32 %v688, 0.5
    %v690 = vadd.f32 %v689, 0.5
    %v691 = vmul.f32 %v690, %v655
    %693 = vrot.lane.b32.xlu0 %v688, 64
    %v694 = vpop.permute.xlu0 %693
    %v696 = vmul.f32 %v690, %v694
    %698 = vrot.lane.b32.xlu0 %v696, 32
    %v699 = vpop.permute.xlu0 %698
    %v701 = vadd.f32 %v691, %v699
    %v702 = vtanh.pop %v701
    %704 = vrot.lane.b32.xlu0 %v702, 64
    %v705 = vpop.permute.xlu0 %704
    %v707 = vmul.f32 %v690, %v705
    %709 = vrot.lane.b32.xlu0 %v707, 32
    %v710 = vpop.permute.xlu0 %709
    %v711 = vsel %vm152, %v710, 0
    %713 = vmatpush.msra.mxu0 0.0
    %714 = vmatpush.msra.mxu0 0.0
    %715 = vmatpush.msra.mxu0 0.0
    %716 = vmatpush.msra.mxu0 0.0
    %717 = vmatpush.msra.mxu0 0.0
    %718 = vmatpush.msra.mxu0 0.0
    %719 = vmatpush.msra.mxu0 0.0
    %720 = vmatpush.msra.mxu0 0.0
    %721 = vmatpush.msra.mxu0 0.0
    %722 = vmatpush.msra.mxu0 0.0
    %723 = vmatpush.msra.mxu0 0.0
    %724 = vmatpush.msra.mxu0 0.0
    %725 = vmatpush.msra.mxu0 %v526
    %726 = vmatpush.msra.mxu0 %v525
    %727 = vmatpush.msra.mxu0 %v524
    %728 = vmatpush.msra.mxu0 %v523
    %729 = vmatmul.f32.gmra.mxu0 %v711
    %v730 = vpop.f32.mrf.mxu0
    %v731 = vadd.f32 0.0, %v730
    %732 = vdwg.mxu0
    %v733 = vadd.f32 %v561, %v731
    %v734 = vtanh.pop %v733
    %v735 = vmul.f32 %v734, 0.5
    %v736 = vadd.f32 %v735, 0.5
    %v737 = vmul.f32 %v736, %v701
    %739 = vrot.lane.b32.xlu0 %v734, 64
    %v740 = vpop.permute.xlu0 %739
    %v742 = vmul.f32 %v736, %v740
    %744 = vrot.lane.b32.xlu0 %v742, 32
    %v745 = vpop.permute.xlu0 %744
    %v747 = vadd.f32 %v737, %v745
    %v748 = vtanh.pop %v747
    %750 = vrot.lane.b32.xlu0 %v748, 64
    %v751 = vpop.permute.xlu0 %750
    %v753 = vmul.f32 %v736, %v751
    %755 = vrot.lane.b32.xlu0 %v753, 32
    %v756 = vpop.permute.xlu0 %755
    %v757 = vsel %vm152, %v756, 0
    %759 = vmatpush.msra.mxu0 0.0
    %760 = vmatpush.msra.mxu0 0.0
    %761 = vmatpush.msra.mxu0 0.0
    %762 = vmatpush.msra.mxu0 0.0
    %763 = vmatpush.msra.mxu0 0.0
    %764 = vmatpush.msra.mxu0 0.0
    %765 = vmatpush.msra.mxu0 0.0
    %766 = vmatpush.msra.mxu0 0.0
    %767 = vmatpush.msra.mxu0 0.0
    %768 = vmatpush.msra.mxu0 0.0
    %769 = vmatpush.msra.mxu0 0.0
    %770 = vmatpush.msra.mxu0 0.0
    %771 = vmatpush.msra.mxu0 %v526
    %772 = vmatpush.msra.mxu0 %v525
    %773 = vmatpush.msra.mxu0 %v524
    %774 = vmatpush.msra.mxu0 %v523
    %775 = vmatmul.f32.gmra.mxu0 %v757
    %v776 = vpop.f32.mrf.mxu0
    %v777 = vadd.f32 0.0, %v776
    %778 = vdwg.mxu0
    %v779 = vadd.f32 %v564, %v777
    %v780 = vtanh.pop %v779
    %v781 = vmul.f32 %v780, 0.5
    %v782 = vadd.f32 %v781, 0.5
    %v783 = vmul.f32 %v782, %v747
    %785 = vrot.lane.b32.xlu0 %v780, 64
    %v786 = vpop.permute.xlu0 %785
    %v788 = vmul.f32 %v782, %v786
    %790 = vrot.lane.b32.xlu0 %v788, 32
    %v791 = vpop.permute.xlu0 %790
    %v793 = vadd.f32 %v783, %v791
    %v794 = vtanh.pop %v793
    %796 = vrot.lane.b32.xlu0 %v794, 64
    %v797 = vpop.permute.xlu0 %796
    %v799 = vmul.f32 %v782, %v797
    %801 = vrot.lane.b32.xlu0 %v799, 32
    %v802 = vpop.permute.xlu0 %801
    %v803 = vsel %vm152, %v802, 0
    %805 = vmatpush.msra.mxu0 0.0
    %806 = vmatpush.msra.mxu0 0.0
    %807 = vmatpush.msra.mxu0 0.0
    %808 = vmatpush.msra.mxu0 0.0
    %809 = vmatpush.msra.mxu0 0.0
    %810 = vmatpush.msra.mxu0 0.0
    %811 = vmatpush.msra.mxu0 0.0
    %812 = vmatpush.msra.mxu0 0.0
    %813 = vmatpush.msra.mxu0 0.0
    %814 = vmatpush.msra.mxu0 0.0
    %815 = vmatpush.msra.mxu0 0.0
    %816 = vmatpush.msra.mxu0 0.0
    %817 = vmatpush.msra.mxu0 %v526
    %818 = vmatpush.msra.mxu0 %v525
    %819 = vmatpush.msra.mxu0 %v524
    %820 = vmatpush.msra.mxu0 %v523
    %821 = vmatmul.f32.gmra.mxu0 %v803
    %v822 = vpop.f32.mrf.mxu0
    %v823 = vadd.f32 0.0, %v822
    %824 = vdwg.mxu0
    %v825 = vadd.f32 %v567, %v823
    %v826 = vtanh.pop %v825
    %v827 = vmul.f32 %v826, 0.5
    %v828 = vadd.f32 %v827, 0.5
    %v829 = vmul.f32 %v828, %v793
    %831 = vrot.lane.b32.xlu0 %v826, 64
    %v832 = vpop.permute.xlu0 %831
    %v834 = vmul.f32 %v828, %v832
    %836 = vrot.lane.b32.xlu0 %v834, 32
    %v837 = vpop.permute.xlu0 %836
    %v839 = vadd.f32 %v829, %v837
    %v840 = vtanh.pop %v839
    %842 = vrot.lane.b32.xlu0 %v840, 64
    %v843 = vpop.permute.xlu0 %842
    %v845 = vmul.f32 %v828, %v843
    %847 = vrot.lane.b32.xlu0 %v845, 32
    %v848 = vpop.permute.xlu0 %847
    %v849 = vsel %vm152, %v848, 0
    %851 = vmatpush.msra.mxu0 0.0
    %852 = vmatpush.msra.mxu0 0.0
    %853 = vmatpush.msra.mxu0 0.0
    %854 = vmatpush.msra.mxu0 0.0
    %855 = vmatpush.msra.mxu0 0.0
    %856 = vmatpush.msra.mxu0 0.0
    %857 = vmatpush.msra.mxu0 0.0
    %858 = vmatpush.msra.mxu0 0.0
    %859 = vmatpush.msra.mxu0 0.0
    %860 = vmatpush.msra.mxu0 0.0
    %861 = vmatpush.msra.mxu0 0.0
    %862 = vmatpush.msra.mxu0 0.0
    %863 = vmatpush.msra.mxu0 %v526
    %864 = vmatpush.msra.mxu0 %v525
    %865 = vmatpush.msra.mxu0 %v524
    %866 = vmatpush.msra.mxu0 %v523
    %867 = vmatmul.f32.gmra.mxu0 %v849
    %v868 = vpop.f32.mrf.mxu0
    %v869 = vadd.f32 0.0, %v868
    %870 = vdwg.mxu0
    %v871 = vadd.f32 %v570, %v869
    %v872 = vtanh.pop %v871
    %v873 = vmul.f32 %v872, 0.5
    %v874 = vadd.f32 %v873, 0.5
    %v875 = vmul.f32 %v874, %v839
    %877 = vrot.lane.b32.xlu0 %v872, 64
    %v878 = vpop.permute.xlu0 %877
    %v880 = vmul.f32 %v874, %v878
    %882 = vrot.lane.b32.xlu0 %v880, 32
    %v883 = vpop.permute.xlu0 %882
    %v885 = vadd.f32 %v875, %v883
    %v886 = vtanh.pop %v885
    %888 = vrot.lane.b32.xlu0 %v886, 64
    %v889 = vpop.permute.xlu0 %888
    %v891 = vmul.f32 %v874, %v889
    %893 = vrot.lane.b32.xlu0 %v891, 32
    %v894 = vpop.permute.xlu0 %893
    %v895 = vsel %vm152, %v894, 0
    %897 = vmatpush.msra.mxu0 0.0
    %898 = vmatpush.msra.mxu0 0.0
    %899 = vmatpush.msra.mxu0 0.0
    %900 = vmatpush.msra.mxu0 0.0
    %901 = vmatpush.msra.mxu0 0.0
    %902 = vmatpush.msra.mxu0 0.0
    %903 = vmatpush.msra.mxu0 0.0
    %904 = vmatpush.msra.mxu0 0.0
    %905 = vmatpush.msra.mxu0 0.0
    %906 = vmatpush.msra.mxu0 0.0
    %907 = vmatpush.msra.mxu0 0.0
    %908 = vmatpush.msra.mxu0 0.0
    %909 = vmatpush.msra.mxu0 %v526
    %910 = vmatpush.msra.mxu0 %v525
    %911 = vmatpush.msra.mxu0 %v524
    %912 = vmatpush.msra.mxu0 %v523
    %913 = vmatmul.f32.gmra.mxu0 %v895
    %v914 = vpop.f32.mrf.mxu0
    %v915 = vadd.f32 0.0, %v914
    %916 = vdwg.mxu0
    %v917 = vadd.f32 %v573, %v915
    %v918 = vtanh.pop %v917
    %v919 = vmul.f32 %v918, 0.5
    %v920 = vadd.f32 %v919, 0.5
    %v921 = vmul.f32 %v920, %v885
    %923 = vrot.lane.b32.xlu0 %v918, 64
    %v924 = vpop.permute.xlu0 %923
    %v926 = vmul.f32 %v920, %v924
    %928 = vrot.lane.b32.xlu0 %v926, 32
    %v929 = vpop.permute.xlu0 %928
    %v931 = vadd.f32 %v921, %v929
    %v932 = vtanh.pop %v931
    %934 = vrot.lane.b32.xlu0 %v932, 64
    %v935 = vpop.permute.xlu0 %934
    %v937 = vmul.f32 %v920, %v935
    %v938 = vld [vmem:[#allocation4] sm:$0xff]
    %v939 = vld [vmem:[#allocation4 + $0x8] sm:$0xff]
    %v940 = vld [vmem:[#allocation4 + $0x10] sm:$0xff]
    %v941 = vld [vmem:[#allocation4 + $0x18] sm:$0xff]
    %v942 = vld [vmem:[#allocation4 + $0x20] sm:$0xff]
    %v943 = vld [vmem:[#allocation4 + $0x28] sm:$0xff]
    %v944 = vld [vmem:[#allocation4 + $0x30] sm:$0xff]
    %v945 = vld [vmem:[#allocation4 + $0x38] sm:$0xff]
    %v946 = vld [vmem:[#allocation4 + $0x40] sm:$0x1]
    %v947 = vperm.slane %v946, 0
    %949 = vrot.lane.b32.xlu0 %v937, 32
    %v950 = vpop.permute.xlu0 %949
    %v951 = vsel %vm152, %v950, 0
    %953 = vmatpush.msra.mxu0 0.0
    %954 = vmatpush.msra.mxu0 0.0
    %955 = vmatpush.msra.mxu0 0.0
    %956 = vmatpush.msra.mxu0 0.0
    %957 = vmatpush.msra.mxu0 0.0
    %958 = vmatpush.msra.mxu0 0.0
    %959 = vmatpush.msra.mxu0 0.0
    %960 = vmatpush.msra.mxu0 0.0
    %961 = vmatpush.msra.mxu0 0.0
    %962 = vmatpush.msra.mxu0 0.0
    %963 = vmatpush.msra.mxu0 0.0
    %964 = vmatpush.msra.mxu0 0.0
    %965 = vmatpush.msra.mxu0 %v941
    %966 = vmatpush.msra.mxu0 %v940
    %967 = vmatpush.msra.mxu0 %v939
    %968 = vmatpush.msra.mxu0 %v938
    %969 = vmatmul.f32.gmra.mxu0 %v951
    %v970 = vpop.f32.mrf.mxu0
    %v971 = vadd.f32 %v947, %v970
    %972 = vdwg.mxu0
    %973 = vmatpush.msra.mxu0 0.0
    %974 = vmatpush.msra.mxu0 0.0
    %975 = vmatpush.msra.mxu0 0.0
    %976 = vmatpush.msra.mxu0 0.0
    %977 = vmatpush.msra.mxu0 0.0
    %978 = vmatpush.msra.mxu0 0.0
    %979 = vmatpush.msra.mxu0 0.0
    %980 = vmatpush.msra.mxu0 0.0
    %981 = vmatpush.msra.mxu0 0.0
    %982 = vmatpush.msra.mxu0 0.0
    %983 = vmatpush.msra.mxu0 0.0
    %984 = vmatpush.msra.mxu0 0.0
    %985 = vmatpush.msra.mxu0 %v945
    %986 = vmatpush.msra.mxu0 %v944
    %987 = vmatpush.msra.mxu0 %v943
    %988 = vmatpush.msra.mxu0 %v942
    %989 = vmatmul.f32.gmra.mxu0 %v154
    %v990 = vpop.f32.mrf.mxu0
    %v991 = vadd.f32 0.0, %v990
    %992 = vdwg.mxu0
    %v993 = vadd.f32 %v971, %v991
    %v994 = vtanh.pop %v993
    %v995 = vmul.f32 %v994, 0.5
    %v996 = vadd.f32 %v995, 0.5
    %v997 = vmul.f32 %v996, 0.0
    %999 = vrot.lane.b32.xlu0 %v994, 64
    %v1000 = vpop.permute.xlu0 %999
    %v1002 = vmul.f32 %v996, %v1000
    %1004 = vrot.lane.b32.xlu0 %v1002, 32
    %v1005 = vpop.permute.xlu0 %1004
    %v1007 = vadd.f32 %v997, %v1005
    %v1008 = vtanh.pop %v1007
    %1010 = vrot.lane.b32.xlu0 %v1008, 64
    %v1011 = vpop.permute.xlu0 %1010
    %v1013 = vmul.f32 %v996, %v1011
    %1015 = vrot.lane.b32.xlu0 %v1013, 32
    %v1016 = vpop.permute.xlu0 %1015
    %v1017 = vsel %vm152, %v1016, 0
    %1019 = vmatpush.msra.mxu0 0.0
    %1020 = vmatpush.msra.mxu0 0.0
    %1021 = vmatpush.msra.mxu0 0.0
    %1022 = vmatpush.msra.mxu0 0.0
    %1023 = vmatpush.msra.mxu0 0.0
    %1024 = vmatpush.msra.mxu0 0.0
    %1025 = vmatpush.msra.mxu0 0.0
    %1026 = vmatpush.msra.mxu0 0.0
    %1027 = vmatpush.msra.mxu0 0.0
    %1028 = vmatpush.msra.mxu0 0.0
    %1029 = vmatpush.msra.mxu0 0.0
    %1030 = vmatpush.msra.mxu0 0.0
    %1031 = vmatpush.msra.mxu0 %v945
    %1032 = vmatpush.msra.mxu0 %v944
    %1033 = vmatpush.msra.mxu0 %v943
    %1034 = vmatpush.msra.mxu0 %v942
    %1035 = vmatmul.f32.gmra.mxu0 %v1017
    %v1036 = vpop.f32.mrf.mxu0
    %v1037 = vadd.f32 0.0, %v1036
    %1038 = vdwg.mxu0
    %v1039 = vadd.f32 %v971, %v1037
    %v1040 = vtanh.pop %v1039
    %v1041 = vmul.f32 %v1040, 0.5
    %v1042 = vadd.f32 %v1041, 0.5
    %v1043 = vmul.f32 %v1042, %v1007
    %1045 = vrot.lane.b32.xlu0 %v1040, 64
    %v1046 = vpop.permute.xlu0 %1045
    %v1048 = vmul.f32 %v1042, %v1046
    %1050 = vrot.lane.b32.xlu0 %v1048, 32
    %v1051 = vpop.permute.xlu0 %1050
    %v1053 = vadd.f32 %v1043, %v1051
    %v1054 = vtanh.pop %v1053
    %1056 = vrot.lane.b32.xlu0 %v1054, 64
    %v1057 = vpop.permute.xlu0 %1056
    %v1059 = vmul.f32 %v1042, %v1057
    %1061 = vrot.lane.b32.xlu0 %v1059, 32
    %v1062 = vpop.permute.xlu0 %1061
    %v1063 = vsel %vm152, %v1062, 0
    %1065 = vmatpush.msra.mxu0 0.0
    %1066 = vmatpush.msra.mxu0 0.0
    %1067 = vmatpush.msra.mxu0 0.0
    %1068 = vmatpush.msra.mxu0 0.0
    %1069 = vmatpush.msra.mxu0 0.0
    %1070 = vmatpush.msra.mxu0 0.0
    %1071 = vmatpush.msra.mxu0 0.0
    %1072 = vmatpush.msra.mxu0 0.0
    %1073 = vmatpush.msra.mxu0 0.0
    %1074 = vmatpush.msra.mxu0 0.0
    %1075 = vmatpush.msra.mxu0 0.0
    %1076 = vmatpush.msra.mxu0 0.0
    %1077 = vmatpush.msra.mxu0 %v945
    %1078 = vmatpush.msra.mxu0 %v944
    %1079 = vmatpush.msra.mxu0 %v943
    %1080 = vmatpush.msra.mxu0 %v942
    %1081 = vmatmul.f32.gmra.mxu0 %v1063
    %v1082 = vpop.f32.mrf.mxu0
    %v1083 = vadd.f32 0.0, %v1082
    %1084 = vdwg.mxu0
    %v1085 = vadd.f32 %v971, %v1083
    %v1086 = vtanh.pop %v1085
    %v1087 = vmul.f32 %v1086, 0.5
    %v1088 = vadd.f32 %v1087, 0.5
    %v1089 = vmul.f32 %v1088, %v1053
    %1091 = vrot.lane.b32.xlu0 %v1086, 64
    %v1092 = vpop.permute.xlu0 %1091
    %v1094 = vmul.f32 %v1088, %v1092
    %1096 = vrot.lane.b32.xlu0 %v1094, 32
    %v1097 = vpop.permute.xlu0 %1096
    %v1099 = vadd.f32 %v1089, %v1097
    %v1100 = vtanh.pop %v1099
    %1102 = vrot.lane.b32.xlu0 %v1100, 64
    %v1103 = vpop.permute.xlu0 %1102
    %v1105 = vmul.f32 %v1088, %v1103
    %1107 = vrot.lane.b32.xlu0 %v1105, 32
    %v1108 = vpop.permute.xlu0 %1107
    %v1109 = vsel %vm152, %v1108, 0
    %1111 = vmatpush.msra.mxu0 0.0
    %1112 = vmatpush.msra.mxu0 0.0
    %1113 = vmatpush.msra.mxu0 0.0
    %1114 = vmatpush.msra.mxu0 0.0
    %1115 = vmatpush.msra.mxu0 0.0
    %1116 = vmatpush.msra.mxu0 0.0
    %1117 = vmatpush.msra.mxu0 0.0
    %1118 = vmatpush.msra.mxu0 0.0
    %1119 = vmatpush.msra.mxu0 0.0
    %1120 = vmatpush.msra.mxu0 0.0
    %1121 = vmatpush.msra.mxu0 0.0
    %1122 = vmatpush.msra.mxu0 0.0
    %1123 = vmatpush.msra.mxu0 %v945
    %1124 = vmatpush.msra.mxu0 %v944
    %1125 = vmatpush.msra.mxu0 %v943
    %1126 = vmatpush.msra.mxu0 %v942
    %1127 = vmatmul.f32.gmra.mxu0 %v1109
    %v1128 = vpop.f32.mrf.mxu0
    %v1129 = vadd.f32 0.0, %v1128
    %1130 = vdwg.mxu0
    %v1131 = vadd.f32 %v971, %v1129
    %v1132 = vtanh.pop %v1131
    %v1133 = vmul.f32 %v1132, 0.5
    %v1134 = vadd.f32 %v1133, 0.5
    %v1135 = vmul.f32 %v1134, %v1099
    %1137 = vrot.lane.b32.xlu0 %v1132, 64
    %v1138 = vpop.permute.xlu0 %1137
    %v1140 = vmul.f32 %v1134, %v1138
    %1142 = vrot.lane.b32.xlu0 %v1140, 32
    %v1143 = vpop.permute.xlu0 %1142
    %v1145 = vadd.f32 %v1135, %v1143
    %v1146 = vtanh.pop %v1145
    %1148 = vrot.lane.b32.xlu0 %v1146, 64
    %v1149 = vpop.permute.xlu0 %1148
    %v1151 = vmul.f32 %v1134, %v1149
    %1153 = vrot.lane.b32.xlu0 %v1151, 32
    %v1154 = vpop.permute.xlu0 %1153
    %v1155 = vsel %vm152, %v1154, 0
    %1157 = vmatpush.msra.mxu0 0.0
    %1158 = vmatpush.msra.mxu0 0.0
    %1159 = vmatpush.msra.mxu0 0.0
    %1160 = vmatpush.msra.mxu0 0.0
    %1161 = vmatpush.msra.mxu0 0.0
    %1162 = vmatpush.msra.mxu0 0.0
    %1163 = vmatpush.msra.mxu0 0.0
    %1164 = vmatpush.msra.mxu0 0.0
    %1165 = vmatpush.msra.mxu0 0.0
    %1166 = vmatpush.msra.mxu0 0.0
    %1167 = vmatpush.msra.mxu0 0.0
    %1168 = vmatpush.msra.mxu0 0.0
    %1169 = vmatpush.msra.mxu0 %v945
    %1170 = vmatpush.msra.mxu0 %v944
    %1171 = vmatpush.msra.mxu0 %v943
    %1172 = vmatpush.msra.mxu0 %v942
    %1173 = vmatmul.f32.gmra.mxu0 %v1155
    %v1174 = vpop.f32.mrf.mxu0
    %v1175 = vadd.f32 0.0, %v1174
    %1176 = vdwg.mxu0
    %v1177 = vadd.f32 %v971, %v1175
    %v1178 = vtanh.pop %v1177
    %v1179 = vmul.f32 %v1178, 0.5
    %v1180 = vadd.f32 %v1179, 0.5
    %v1181 = vmul.f32 %v1180, %v1145
    %1183 = vrot.lane.b32.xlu0 %v1178, 64
    %v1184 = vpop.permute.xlu0 %1183
    %v1186 = vmul.f32 %v1180, %v1184
    %1188 = vrot.lane.b32.xlu0 %v1186, 32
    %v1189 = vpop.permute.xlu0 %1188
    %v1191 = vadd.f32 %v1181, %v1189
    %v1192 = vtanh.pop %v1191
    %1194 = vrot.lane.b32.xlu0 %v1192, 64
    %v1195 = vpop.permute.xlu0 %1194
    %v1197 = vmul.f32 %v1180, %v1195
    %1199 = vrot.lane.b32.xlu0 %v1197, 32
    %v1200 = vpop.permute.xlu0 %1199
    %v1201 = vsel %vm152, %v1200, 0
    %1203 = vmatpush.msra.mxu0 0.0
    %1204 = vmatpush.msra.mxu0 0.0
    %1205 = vmatpush.msra.mxu0 0.0
    %1206 = vmatpush.msra.mxu0 0.0
    %1207 = vmatpush.msra.mxu0 0.0
    %1208 = vmatpush.msra.mxu0 0.0
    %1209 = vmatpush.msra.mxu0 0.0
    %1210 = vmatpush.msra.mxu0 0.0
    %1211 = vmatpush.msra.mxu0 0.0
    %1212 = vmatpush.msra.mxu0 0.0
    %1213 = vmatpush.msra.mxu0 0.0
    %1214 = vmatpush.msra.mxu0 0.0
    %1215 = vmatpush.msra.mxu0 %v945
    %1216 = vmatpush.msra.mxu0 %v944
    %1217 = vmatpush.msra.mxu0 %v943
    %1218 = vmatpush.msra.mxu0 %v942
    %1219 = vmatmul.f32.gmra.mxu0 %v1201
    %v1220 = vpop.f32.mrf.mxu0
    %v1221 = vadd.f32 0.0, %v1220
    %1222 = vdwg.mxu0
    %v1223 = vadd.f32 %v971, %v1221
    %v1224 = vtanh.pop %v1223
    %v1225 = vmul.f32 %v1224, 0.5
    %v1226 = vadd.f32 %v1225, 0.5
    %v1227 = vmul.f32 %v1226, %v1191
    %1229 = vrot.lane.b32.xlu0 %v1224, 64
    %v1230 = vpop.permute.xlu0 %1229
    %v1232 = vmul.f32 %v1226, %v1230
    %1234 = vrot.lane.b32.xlu0 %v1232, 32
    %v1235 = vpop.permute.xlu0 %1234
    %v1237 = vadd.f32 %v1227, %v1235
    %v1238 = vtanh.pop %v1237
    %1240 = vrot.lane.b32.xlu0 %v1238, 64
    %v1241 = vpop.permute.xlu0 %1240
    %v1243 = vmul.f32 %v1226, %v1241
    %1245 = vrot.lane.b32.xlu0 %v1243, 32
    %v1246 = vpop.permute.xlu0 %1245
    %v1247 = vsel %vm152, %v1246, 0
    %1249 = vmatpush.msra.mxu0 0.0
    %1250 = vmatpush.msra.mxu0 0.0
    %1251 = vmatpush.msra.mxu0 0.0
    %1252 = vmatpush.msra.mxu0 0.0
    %1253 = vmatpush.msra.mxu0 0.0
    %1254 = vmatpush.msra.mxu0 0.0
    %1255 = vmatpush.msra.mxu0 0.0
    %1256 = vmatpush.msra.mxu0 0.0
    %1257 = vmatpush.msra.mxu0 0.0
    %1258 = vmatpush.msra.mxu0 0.0
    %1259 = vmatpush.msra.mxu0 0.0
    %1260 = vmatpush.msra.mxu0 0.0
    %1261 = vmatpush.msra.mxu0 %v945
    %1262 = vmatpush.msra.mxu0 %v944
    %1263 = vmatpush.msra.mxu0 %v943
    %1264 = vmatpush.msra.mxu0 %v942
    %1265 = vmatmul.f32.gmra.mxu0 %v1247
    %v1266 = vpop.f32.mrf.mxu0
    %v1267 = vadd.f32 0.0, %v1266
    %1268 = vdwg.mxu0
    %v1269 = vadd.f32 %v971, %v1267
    %v1270 = vtanh.pop %v1269
    %v1271 = vmul.f32 %v1270, 0.5
    %v1272 = vadd.f32 %v1271, 0.5
    %v1273 = vmul.f32 %v1272, %v1237
    %1275 = vrot.lane.b32.xlu0 %v1270, 64
    %v1276 = vpop.permute.xlu0 %1275
    %v1278 = vmul.f32 %v1272, %v1276
    %1280 = vrot.lane.b32.xlu0 %v1278, 32
    %v1281 = vpop.permute.xlu0 %1280
    %v1283 = vadd.f32 %v1273, %v1281
    %v1284 = vtanh.pop %v1283
    %1286 = vrot.lane.b32.xlu0 %v1284, 64
    %v1287 = vpop.permute.xlu0 %1286
    %v1289 = vmul.f32 %v1272, %v1287
    %1291 = vrot.lane.b32.xlu0 %v1289, 32
    %v1292 = vpop.permute.xlu0 %1291
    %v1293 = vsel %vm152, %v1292, 0
    %1295 = vmatpush.msra.mxu0 0.0
    %1296 = vmatpush.msra.mxu0 0.0
    %1297 = vmatpush.msra.mxu0 0.0
    %1298 = vmatpush.msra.mxu0 0.0
    %1299 = vmatpush.msra.mxu0 0.0
    %1300 = vmatpush.msra.mxu0 0.0
    %1301 = vmatpush.msra.mxu0 0.0
    %1302 = vmatpush.msra.mxu0 0.0
    %1303 = vmatpush.msra.mxu0 0.0
    %1304 = vmatpush.msra.mxu0 0.0
    %1305 = vmatpush.msra.mxu0 0.0
    %1306 = vmatpush.msra.mxu0 0.0
    %1307 = vmatpush.msra.mxu0 %v945
    %1308 = vmatpush.msra.mxu0 %v944
    %1309 = vmatpush.msra.mxu0 %v943
    %1310 = vmatpush.msra.mxu0 %v942
    %1311 = vmatmul.f32.gmra.mxu0 %v1293
    %v1312 = vpop.f32.mrf.mxu0
    %v1313 = vadd.f32 0.0, %v1312
    %1314 = vdwg.mxu0
    %v1315 = vadd.f32 %v971, %v1313
    %v1316 = vtanh.pop %v1315
    %v1317 = vmul.f32 %v1316, 0.5
    %v1318 = vadd.f32 %v1317, 0.5
    %v1319 = vmul.f32 %v1318, %v1283
    %1321 = vrot.lane.b32.xlu0 %v1316, 64
    %v1322 = vpop.permute.xlu0 %1321
    %v1324 = vmul.f32 %v1318, %v1322
    %1326 = vrot.lane.b32.xlu0 %v1324, 32
    %v1327 = vpop.permute.xlu0 %1326
    %v1329 = vadd.f32 %v1319, %v1327
    %v1330 = vtanh.pop %v1329
    %1332 = vrot.lane.b32.xlu0 %v1330, 64
    %v1333 = vpop.permute.xlu0 %1332
    %v1335 = vmul.f32 %v1318, %v1333
    %v1336 = vld [vmem:[#allocation6] sm:$0xff]
    %v1337 = vld [vmem:[#allocation6 + $0x8] sm:$0xff]
    %v1338 = vld [vmem:[#allocation6 + $0x10] sm:$0xff]
    %v1339 = vld [vmem:[#allocation6 + $0x18] sm:$0xff]
    %v1340 = vld [vmem:[#allocation6 + $0x20] sm:$0xff]
    %v1341 = vld [vmem:[#allocation6 + $0x28] sm:$0xff]
    %v1342 = vld [vmem:[#allocation6 + $0x30] sm:$0xff]
    %v1343 = vld [vmem:[#allocation6 + $0x38] sm:$0xff]
    %v1344 = vld [vmem:[#allocation6 + $0x40] sm:$0x1]
    %v1345 = vperm.slane %v1344, 0
    %1347 = vrot.lane.b32.xlu0 %v1335, 32
    %v1348 = vpop.permute.xlu0 %1347
    %v1349 = vsel %vm152, %v1348, 0
    %1351 = vmatpush.msra.mxu0 0.0
    %1352 = vmatpush.msra.mxu0 0.0
    %1353 = vmatpush.msra.mxu0 0.0
    %1354 = vmatpush.msra.mxu0 0.0
    %1355 = vmatpush.msra.mxu0 0.0
    %1356 = vmatpush.msra.mxu0 0.0
    %1357 = vmatpush.msra.mxu0 0.0
    %1358 = vmatpush.msra.mxu0 0.0
    %1359 = vmatpush.msra.mxu0 0.0
    %1360 = vmatpush.msra.mxu0 0.0
    %1361 = vmatpush.msra.mxu0 0.0
    %1362 = vmatpush.msra.mxu0 0.0
    %1363 = vmatpush.msra.mxu0 %v1339
    %1364 = vmatpush.msra.mxu0 %v1338
    %1365 = vmatpush.msra.mxu0 %v1337
    %1366 = vmatpush.msra.mxu0 %v1336
    %1367 = vmatmul.f32.gmra.mxu0 %v1017
    %v1368 = vpop.f32.mrf.mxu0
    %v1369 = vadd.f32 %v1345, %v1368
    %1370 = vmatmul.f32.gmra.mxu0 %v1063
    %v1371 = vpop.f32.mrf.mxu0
    %v1372 = vadd.f32 %v1345, %v1371
    %1373 = vmatmul.f32.gmra.mxu0 %v1109
    %v1374 = vpop.f32.mrf.mxu0
    %v1375 = vadd.f32 %v1345, %v1374
    %1376 = vmatmul.f32.gmra.mxu0 %v1155
    %v1377 = vpop.f32.mrf.mxu0
    %v1378 = vadd.f32 %v1345, %v1377
    %1379 = vmatmul.f32.gmra.mxu0 %v1201
    %v1380 = vpop.f32.mrf.mxu0
    %v1381 = vadd.f32 %v1345, %v1380
    %1382 = vmatmul.f32.gmra.mxu0 %v1247
    %v1383 = vpop.f32.mrf.mxu0
    %v1384 = vadd.f32 %v1345, %v1383
    %1385 = vmatmul.f32.gmra.mxu0 %v1293
    %v1386 = vpop.f32.mrf.mxu0
    %v1387 = vadd.f32 %v1345, %v1386
    %1388 = vmatmul.f32.gmra.mxu0 %v1349
    %v1389 = vpop.f32.mrf.mxu0
    %v1390 = vadd.f32 %v1345, %v1389
    %1391 = vdwg.mxu0
    %1392 = vmatpush.msra.mxu0 0.0
    %1393 = vmatpush.msra.mxu0 0.0
    %1394 = vmatpush.msra.mxu0 0.0
    %1395 = vmatpush.msra.mxu0 0.0
    %1396 = vmatpush.msra.mxu0 0.0
    %1397 = vmatpush.msra.mxu0 0.0
    %1398 = vmatpush.msra.mxu0 0.0
    %1399 = vmatpush.msra.mxu0 0.0
    %1400 = vmatpush.msra.mxu0 0.0
    %1401 = vmatpush.msra.mxu0 0.0
    %1402 = vmatpush.msra.mxu0 0.0
    %1403 = vmatpush.msra.mxu0 0.0
    %1404 = vmatpush.msra.mxu0 %v1343
    %1405 = vmatpush.msra.mxu0 %v1342
    %1406 = vmatpush.msra.mxu0 %v1341
    %1407 = vmatpush.msra.mxu0 %v1340
    %1408 = vmatmul.f32.gmra.mxu0 %v154
    %v1409 = vpop.f32.mrf.mxu0
    %v1410 = vadd.f32 0.0, %v1409
    %1411 = vdwg.mxu0
    %v1412 = vadd.f32 %v1369, %v1410
    %v1413 = vtanh.pop %v1412
    %v1414 = vmul.f32 %v1413, 0.5
    %v1415 = vadd.f32 %v1414, 0.5
    %v1416 = vmul.f32 %v1415, 0.0
    %1418 = vrot.lane.b32.xlu0 %v1413, 64
    %v1419 = vpop.permute.xlu0 %1418
    %v1421 = vmul.f32 %v1415, %v1419
    %1423 = vrot.lane.b32.xlu0 %v1421, 32
    %v1424 = vpop.permute.xlu0 %1423
    %v1426 = vadd.f32 %v1416, %v1424
    %v1427 = vtanh.pop %v1426
    %1429 = vrot.lane.b32.xlu0 %v1427, 64
    %v1430 = vpop.permute.xlu0 %1429
    %v1432 = vmul.f32 %v1415, %v1430
    %1434 = vrot.lane.b32.xlu0 %v1432, 32
    %v1435 = vpop.permute.xlu0 %1434
    %v1436 = vsel %vm152, %v1435, 0
    %1438 = vmatpush.msra.mxu0 0.0
    %1439 = vmatpush.msra.mxu0 0.0
    %1440 = vmatpush.msra.mxu0 0.0
    %1441 = vmatpush.msra.mxu0 0.0
    %1442 = vmatpush.msra.mxu0 0.0
    %1443 = vmatpush.msra.mxu0 0.0
    %1444 = vmatpush.msra.mxu0 0.0
    %1445 = vmatpush.msra.mxu0 0.0
    %1446 = vmatpush.msra.mxu0 0.0
    %1447 = vmatpush.msra.mxu0 0.0
    %1448 = vmatpush.msra.mxu0 0.0
    %1449 = vmatpush.msra.mxu0 0.0
    %1450 = vmatpush.msra.mxu0 %v1343
    %1451 = vmatpush.msra.mxu0 %v1342
    %1452 = vmatpush.msra.mxu0 %v1341
    %1453 = vmatpush.msra.mxu0 %v1340
    %1454 = vmatmul.f32.gmra.mxu0 %v1436
    %v1455 = vpop.f32.mrf.mxu0
    %v1456 = vadd.f32 0.0, %v1455
    %1457 = vdwg.mxu0
    %v1458 = vadd.f32 %v1372, %v1456
    %v1459 = vtanh.pop %v1458
    %v1460 = vmul.f32 %v1459, 0.5
    %v1461 = vadd.f32 %v1460, 0.5
    %v1462 = vmul.f32 %v1461, %v1426
    %1464 = vrot.lane.b32.xlu0 %v1459, 64
    %v1465 = vpop.permute.xlu0 %1464
    %v1467 = vmul.f32 %v1461, %v1465
    %1469 = vrot.lane.b32.xlu0 %v1467, 32
    %v1470 = vpop.permute.xlu0 %1469
    %v1472 = vadd.f32 %v1462, %v1470
    %v1473 = vtanh.pop %v1472
    %1475 = vrot.lane.b32.xlu0 %v1473, 64
    %v1476 = vpop.permute.xlu0 %1475
    %v1478 = vmul.f32 %v1461, %v1476
    %1480 = vrot.lane.b32.xlu0 %v1478, 32
    %v1481 = vpop.permute.xlu0 %1480
    %v1482 = vsel %vm152, %v1481, 0
    %1484 = vmatpush.msra.mxu0 0.0
    %1485 = vmatpush.msra.mxu0 0.0
    %1486 = vmatpush.msra.mxu0 0.0
    %1487 = vmatpush.msra.mxu0 0.0
    %1488 = vmatpush.msra.mxu0 0.0
    %1489 = vmatpush.msra.mxu0 0.0
    %1490 = vmatpush.msra.mxu0 0.0
    %1491 = vmatpush.msra.mxu0 0.0
    %1492 = vmatpush.msra.mxu0 0.0
    %1493 = vmatpush.msra.mxu0 0.0
    %1494 = vmatpush.msra.mxu0 0.0
    %1495 = vmatpush.msra.mxu0 0.0
    %1496 = vmatpush.msra.mxu0 %v1343
    %1497 = vmatpush.msra.mxu0 %v1342
    %1498 = vmatpush.msra.mxu0 %v1341
    %1499 = vmatpush.msra.mxu0 %v1340
    %1500 = vmatmul.f32.gmra.mxu0 %v1482
    %v1501 = vpop.f32.mrf.mxu0
    %v1502 = vadd.f32 0.0, %v1501
    %1503 = vdwg.mxu0
    %v1504 = vadd.f32 %v1375, %v1502
    %v1505 = vtanh.pop %v1504
    %v1506 = vmul.f32 %v1505, 0.5
    %v1507 = vadd.f32 %v1506, 0.5
    %v1508 = vmul.f32 %v1507, %v1472
    %1510 = vrot.lane.b32.xlu0 %v1505, 64
    %v1511 = vpop.permute.xlu0 %1510
    %v1513 = vmul.f32 %v1507, %v1511
    %1515 = vrot.lane.b32.xlu0 %v1513, 32
    %v1516 = vpop.permute.xlu0 %1515
    %v1518 = vadd.f32 %v1508, %v1516
    %v1519 = vtanh.pop %v1518
    %1521 = vrot.lane.b32.xlu0 %v1519, 64
    %v1522 = vpop.permute.xlu0 %1521
    %v1524 = vmul.f32 %v1507, %v1522
    %1526 = vrot.lane.b32.xlu0 %v1524, 32
    %v1527 = vpop.permute.xlu0 %1526
    %v1528 = vsel %vm152, %v1527, 0
    %1530 = vmatpush.msra.mxu0 0.0
    %1531 = vmatpush.msra.mxu0 0.0
    %1532 = vmatpush.msra.mxu0 0.0
    %1533 = vmatpush.msra.mxu0 0.0
    %1534 = vmatpush.msra.mxu0 0.0
    %1535 = vmatpush.msra.mxu0 0.0
    %1536 = vmatpush.msra.mxu0 0.0
    %1537 = vmatpush.msra.mxu0 0.0
    %1538 = vmatpush.msra.mxu0 0.0
    %1539 = vmatpush.msra.mxu0 0.0
    %1540 = vmatpush.msra.mxu0 0.0
    %1541 = vmatpush.msra.mxu0 0.0
    %1542 = vmatpush.msra.mxu0 %v1343
    %1543 = vmatpush.msra.mxu0 %v1342
    %1544 = vmatpush.msra.mxu0 %v1341
    %1545 = vmatpush.msra.mxu0 %v1340
    %1546 = vmatmul.f32.gmra.mxu0 %v1528
    %v1547 = vpop.f32.mrf.mxu0
    %v1548 = vadd.f32 0.0, %v1547
    %1549 = vdwg.mxu0
    %v1550 = vadd.f32 %v1378, %v1548
    %v1551 = vtanh.pop %v1550
    %v1552 = vmul.f32 %v1551, 0.5
    %v1553 = vadd.f32 %v1552, 0.5
    %v1554 = vmul.f32 %v1553, %v1518
    %1556 = vrot.lane.b32.xlu0 %v1551, 64
    %v1557 = vpop.permute.xlu0 %1556
    %v1559 = vmul.f32 %v1553, %v1557
    %1561 = vrot.lane.b32.xlu0 %v1559, 32
    %v1562 = vpop.permute.xlu0 %1561
    %v1564 = vadd.f32 %v1554, %v1562
    %v1565 = vtanh.pop %v1564
    %1567 = vrot.lane.b32.xlu0 %v1565, 64
    %v1568 = vpop.permute.xlu0 %1567
    %v1570 = vmul.f32 %v1553, %v1568
    %1572 = vrot.lane.b32.xlu0 %v1570, 32
    %v1573 = vpop.permute.xlu0 %1572
    %v1574 = vsel %vm152, %v1573, 0
    %1576 = vmatpush.msra.mxu0 0.0
    %1577 = vmatpush.msra.mxu0 0.0
    %1578 = vmatpush.msra.mxu0 0.0
    %1579 = vmatpush.msra.mxu0 0.0
    %1580 = vmatpush.msra.mxu0 0.0
    %1581 = vmatpush.msra.mxu0 0.0
    %1582 = vmatpush.msra.mxu0 0.0
    %1583 = vmatpush.msra.mxu0 0.0
    %1584 = vmatpush.msra.mxu0 0.0
    %1585 = vmatpush.msra.mxu0 0.0
    %1586 = vmatpush.msra.mxu0 0.0
    %1587 = vmatpush.msra.mxu0 0.0
    %1588 = vmatpush.msra.mxu0 %v1343
    %1589 = vmatpush.msra.mxu0 %v1342
    %1590 = vmatpush.msra.mxu0 %v1341
    %1591 = vmatpush.msra.mxu0 %v1340
    %1592 = vmatmul.f32.gmra.mxu0 %v1574
    %v1593 = vpop.f32.mrf.mxu0
    %v1594 = vadd.f32 0.0, %v1593
    %1595 = vdwg.mxu0
    %v1596 = vadd.f32 %v1381, %v1594
    %v1597 = vtanh.pop %v1596
    %v1598 = vmul.f32 %v1597, 0.5
    %v1599 = vadd.f32 %v1598, 0.5
    %v1600 = vmul.f32 %v1599, %v1564
    %1602 = vrot.lane.b32.xlu0 %v1597, 64
    %v1603 = vpop.permute.xlu0 %1602
    %v1605 = vmul.f32 %v1599, %v1603
    %1607 = vrot.lane.b32.xlu0 %v1605, 32
    %v1608 = vpop.permute.xlu0 %1607
    %v1610 = vadd.f32 %v1600, %v1608
    %v1611 = vtanh.pop %v1610
    %1613 = vrot.lane.b32.xlu0 %v1611, 64
    %v1614 = vpop.permute.xlu0 %1613
    %v1616 = vmul.f32 %v1599, %v1614
    %1618 = vrot.lane.b32.xlu0 %v1616, 32
    %v1619 = vpop.permute.xlu0 %1618
    %v1620 = vsel %vm152, %v1619, 0
    %1622 = vmatpush.msra.mxu0 0.0
    %1623 = vmatpush.msra.mxu0 0.0
    %1624 = vmatpush.msra.mxu0 0.0
    %1625 = vmatpush.msra.mxu0 0.0
    %1626 = vmatpush.msra.mxu0 0.0
    %1627 = vmatpush.msra.mxu0 0.0
    %1628 = vmatpush.msra.mxu0 0.0
    %1629 = vmatpush.msra.mxu0 0.0
    %1630 = vmatpush.msra.mxu0 0.0
    %1631 = vmatpush.msra.mxu0 0.0
    %1632 = vmatpush.msra.mxu0 0.0
    %1633 = vmatpush.msra.mxu0 0.0
    %1634 = vmatpush.msra.mxu0 %v1343
    %1635 = vmatpush.msra.mxu0 %v1342
    %1636 = vmatpush.msra.mxu0 %v1341
    %1637 = vmatpush.msra.mxu0 %v1340
    %1638 = vmatmul.f32.gmra.mxu0 %v1620
    %v1639 = vpop.f32.mrf.mxu0
    %v1640 = vadd.f32 0.0, %v1639
    %1641 = vdwg.mxu0
    %v1642 = vadd.f32 %v1384, %v1640
    %v1643 = vtanh.pop %v1642
    %v1644 = vmul.f32 %v1643, 0.5
    %v1645 = vadd.f32 %v1644, 0.5
    %v1646 = vmul.f32 %v1645, %v1610
    %1648 = vrot.lane.b32.xlu0 %v1643, 64
    %v1649 = vpop.permute.xlu0 %1648
    %v1651 = vmul.f32 %v1645, %v1649
    %1653 = vrot.lane.b32.xlu0 %v1651, 32
    %v1654 = vpop.permute.xlu0 %1653
    %v1656 = vadd.f32 %v1646, %v1654
    %v1657 = vtanh.pop %v1656
    %1659 = vrot.lane.b32.xlu0 %v1657, 64
    %v1660 = vpop.permute.xlu0 %1659
    %v1662 = vmul.f32 %v1645, %v1660
    %1664 = vrot.lane.b32.xlu0 %v1662, 32
    %v1665 = vpop.permute.xlu0 %1664
    %v1666 = vsel %vm152, %v1665, 0
    %1668 = vmatpush.msra.mxu0 0.0
    %1669 = vmatpush.msra.mxu0 0.0
    %1670 = vmatpush.msra.mxu0 0.0
    %1671 = vmatpush.msra.mxu0 0.0
    %1672 = vmatpush.msra.mxu0 0.0
    %1673 = vmatpush.msra.mxu0 0.0
    %1674 = vmatpush.msra.mxu0 0.0
    %1675 = vmatpush.msra.mxu0 0.0
    %1676 = vmatpush.msra.mxu0 0.0
    %1677 = vmatpush.msra.mxu0 0.0
    %1678 = vmatpush.msra.mxu0 0.0
    %1679 = vmatpush.msra.mxu0 0.0
    %1680 = vmatpush.msra.mxu0 %v1343
    %1681 = vmatpush.msra.mxu0 %v1342
    %1682 = vmatpush.msra.mxu0 %v1341
    %1683 = vmatpush.msra.mxu0 %v1340
    %1684 = vmatmul.f32.gmra.mxu0 %v1666
    %v1685 = vpop.f32.mrf.mxu0
    %v1686 = vadd.f32 0.0, %v1685
    %1687 = vdwg.mxu0
    %v1688 = vadd.f32 %v1387, %v1686
    %v1689 = vtanh.pop %v1688
    %v1690 = vmul.f32 %v1689, 0.5
    %v1691 = vadd.f32 %v1690, 0.5
    %v1692 = vmul.f32 %v1691, %v1656
    %1694 = vrot.lane.b32.xlu0 %v1689, 64
    %v1695 = vpop.permute.xlu0 %1694
    %v1697 = vmul.f32 %v1691, %v1695
    %1699 = vrot.lane.b32.xlu0 %v1697, 32
    %v1700 = vpop.permute.xlu0 %1699
    %v1702 = vadd.f32 %v1692, %v1700
    %v1703 = vtanh.pop %v1702
    %1705 = vrot.lane.b32.xlu0 %v1703, 64
    %v1706 = vpop.permute.xlu0 %1705
    %v1708 = vmul.f32 %v1691, %v1706
    %1710 = vrot.lane.b32.xlu0 %v1708, 32
    %v1711 = vpop.permute.xlu0 %1710
    %v1712 = vsel %vm152, %v1711, 0
    %1714 = vmatpush.msra.mxu0 0.0
    %1715 = vmatpush.msra.mxu0 0.0
    %1716 = vmatpush.msra.mxu0 0.0
    %1717 = vmatpush.msra.mxu0 0.0
    %1718 = vmatpush.msra.mxu0 0.0
    %1719 = vmatpush.msra.mxu0 0.0
    %1720 = vmatpush.msra.mxu0 0.0
    %1721 = vmatpush.msra.mxu0 0.0
    %1722 = vmatpush.msra.mxu0 0.0
    %1723 = vmatpush.msra.mxu0 0.0
    %1724 = vmatpush.msra.mxu0 0.0
    %1725 = vmatpush.msra.mxu0 0.0
    %1726 = vmatpush.msra.mxu0 %v1343
    %1727 = vmatpush.msra.mxu0 %v1342
    %1728 = vmatpush.msra.mxu0 %v1341
    %1729 = vmatpush.msra.mxu0 %v1340
    %1730 = vmatmul.f32.gmra.mxu0 %v1712
    %v1731 = vpop.f32.mrf.mxu0
    %v1732 = vadd.f32 0.0, %v1731
    %1733 = vdwg.mxu0
    %v1734 = vadd.f32 %v1390, %v1732
    %v1735 = vtanh.pop %v1734
    %v1736 = vmul.f32 %v1735, 0.5
    %v1737 = vadd.f32 %v1736, 0.5
    %v1738 = vmul.f32 %v1737, %v1702
    %1740 = vrot.lane.b32.xlu0 %v1735, 64
    %v1741 = vpop.permute.xlu0 %1740
    %v1743 = vmul.f32 %v1737, %v1741
    %1745 = vrot.lane.b32.xlu0 %v1743, 32
    %v1746 = vpop.permute.xlu0 %1745
    %v1748 = vadd.f32 %v1738, %v1746
    %v1749 = vtanh.pop %v1748
    %1751 = vrot.lane.b32.xlu0 %v1749, 64
    %v1752 = vpop.permute.xlu0 %1751
    %v1754 = vmul.f32 %v1737, %v1752
    %v1755 = vld [vmem:[%s5] sm:$0xff]
    %v1756 = vld [vmem:[%s5 + $0x8] sm:$0xff]
    %v1757 = vld [vmem:[%s5 + $0x10] sm:$0xff]
    %v1758 = vld [vmem:[%s5 + $0x18] sm:$0xff]
    %v1759 = vld [vmem:[%s5 + $0x20] sm:$0x1]
    %v1760 = vperm.slane %v1759, 0
    %1762 = vrot.lane.b32.xlu0 %v1754, 32
    %v1763 = vpop.permute.xlu0 %1762
    %v1764 = vsel %vm152, %v1763, 0
    %1766 = vmatpush.msra.mxu0 0.0
    %1767 = vmatpush.msra.mxu0 0.0
    %1768 = vmatpush.msra.mxu0 0.0
    %1769 = vmatpush.msra.mxu0 0.0
    %1770 = vmatpush.msra.mxu0 0.0
    %1771 = vmatpush.msra.mxu0 0.0
    %1772 = vmatpush.msra.mxu0 0.0
    %1773 = vmatpush.msra.mxu0 0.0
    %1774 = vmatpush.msra.mxu0 0.0
    %1775 = vmatpush.msra.mxu0 0.0
    %1776 = vmatpush.msra.mxu0 0.0
    %1777 = vmatpush.msra.mxu0 0.0
    %1778 = vmatpush.msra.mxu0 %v1758
    %1779 = vmatpush.msra.mxu0 %v1757
    %1780 = vmatpush.msra.mxu0 %v1756
    %1781 = vmatpush.msra.mxu0 %v1755
    %1782 = vmatmul.f32.gmra.mxu0 %v1436
    %v1783 = vpop.f32.mrf.mxu0
    %v1784 = vadd.f32 %v1760, %v1783
    %1785 = vmatmul.f32.gmra.mxu0 %v1482
    %v1786 = vpop.f32.mrf.mxu0
    %v1787 = vadd.f32 %v1760, %v1786
    %1788 = vmatmul.f32.gmra.mxu0 %v1528
    %v1789 = vpop.f32.mrf.mxu0
    %v1790 = vadd.f32 %v1760, %v1789
    %1791 = vmatmul.f32.gmra.mxu0 %v1574
    %v1792 = vpop.f32.mrf.mxu0
    %v1793 = vadd.f32 %v1760, %v1792
    %1794 = vmatmul.f32.gmra.mxu0 %v1620
    %v1795 = vpop.f32.mrf.mxu0
    %v1796 = vadd.f32 %v1760, %v1795
    %1797 = vmatmul.f32.gmra.mxu0 %v1666
    %v1798 = vpop.f32.mrf.mxu0
    %v1799 = vadd.f32 %v1760, %v1798
    %1800 = vmatmul.f32.gmra.mxu0 %v1712
    %v1801 = vpop.f32.mrf.mxu0
    %v1802 = vadd.f32 %v1760, %v1801
    %1803 = vmatmul.f32.gmra.mxu0 %v1764
    %v1804 = vpop.f32.mrf.mxu0
    %v1805 = vadd.f32 %v1760, %v1804
    %1806 = vdwg.mxu0
    %1807 = vst.msk [vmem:[%s6] sm:$0xff] %vm86, %v1784
    %1808 = vst.msk [vmem:[%s6 + $0x8] sm:$0xff] %vm86, %v1787
    %1809 = vst.msk [vmem:[%s6 + $0x10] sm:$0xff] %vm86, %v1790
    %1810 = vst.msk [vmem:[%s6 + $0x18] sm:$0xff] %vm86, %v1793
    %1811 = vst.msk [vmem:[%s6 + $0x20] sm:$0xff] %vm86, %v1796
    %1812 = vst.msk [vmem:[%s6 + $0x28] sm:$0xff] %vm86, %v1799
    %1813 = vst.msk [vmem:[%s6 + $0x30] sm:$0xff] %vm86, %v1802
    %1814 = vst.msk [vmem:[%s6 + $0x38] sm:$0xff] %vm86, %v1805
    // Predicated region
    $region38: #{tpu_custom_call.1} parent=1 // pred_check
      _
    $region39: #{tpu_custom_call.1} parent=1 // pred_check_branch
      %1816 = sbr.rel (0) target = $region41
    $region40: #{tpu_custom_call.1} parent=1 // pred_region
      _
    $region41: #{tpu_custom_call.1} parent=1 // pred_fallthru
      _
    // Predicated region
    $region42: #{tpu_custom_call.1} parent=1 // pred_check
      _
    $region43: #{tpu_custom_call.1} parent=1 // pred_check_branch
      %1818 = sbr.rel (0) target = $region45
    $region44: #{tpu_custom_call.1} parent=1 // pred_region
      _
    $region45: #{tpu_custom_call.1} parent=1 // pred_fallthru
      _
    %1819 = vsyncpa [#allocation3], 1
    %1820 = vsyncpa [#allocation5], 1

</llo_original>
